<compile_context>
chip_gen: v7x
topology: tpu7x:2x2x1
jax: 0.10.0
libtpu: 0.0.40
codegen_flags: <defaults>
</compile_context>

<pallas_src>
import functools
import math

import jax
import jax.numpy as jnp
from jax.experimental import pallas as pl
from jax.experimental.pallas import tpu as pltpu


def transformer_block_kernel(x_ref, wqkv_ref, wo_ref, win_ref, bin_ref,
                             wout_ref, bout_ref, o_ref,
                             *, batch_tile, seq_len, num_heads, d_head,
                             act_type):
    Bt, P, H, Dh = batch_tile, seq_len, num_heads, d_head
    HD = H * Dh
    cdt = wqkv_ref.dtype                       # matmul-input dtype (bf16)

    x = x_ref[...].astype(jnp.float32)         # (Bt*P, D), f32 residual stream

    # ---- fused Q/K/V projection: one wide MXU matmul ----------------------
    # W_Q already carries the 1/sqrt(d_head) softmax scale (folded in wrapper).
    qkv = jnp.dot(x.astype(cdt), wqkv_ref[...],
                  preferred_element_type=jnp.float32)      # (Bt*P, 3*H*Dh)

    # causal mask shared by every (batch, head) pair
    row = jax.lax.broadcasted_iota(jnp.int32, (P, P), 0)
    col = jax.lax.broadcasted_iota(jnp.int32, (P, P), 1)
    causal = col <= row

    # ---- attention ---------------------------------------------------------
    # Small static loops (Bt, H are tiny here).  For production P/H this
    # section should be flash-tiled over query/key blocks with running
    # (m, l, acc) scratch instead of materializing (P, P) scores per head.
    z_rows = []
    for b in range(Bt):
        r0 = b * P
        z_heads = []
        for h in range(H):
            q = qkv[r0:r0 + P, h * Dh:(h + 1) * Dh]                  # (P, Dh)
            k = qkv[r0:r0 + P, HD + h * Dh:HD + (h + 1) * Dh]        # (P, Dh)
            v = qkv[r0:r0 + P, 2 * HD + h * Dh:2 * HD + (h + 1) * Dh]

            scores = jax.lax.dot_general(
                q.astype(cdt), k.astype(cdt), (((1,), (1,)), ((), ())),
                preferred_element_type=jnp.float32)                  # (P, P)
            masked = jnp.where(causal, scores, jnp.float32(-1e10))
            m = jnp.max(masked, axis=-1, keepdims=True)
            e = jnp.exp(masked - m)
            attn = e * pl.reciprocal(jnp.sum(e, axis=-1, keepdims=True),
                                     approx=True)
            z_heads.append(jnp.dot(attn.astype(cdt), v.astype(cdt),
                                   preferred_element_type=jnp.float32))
        z_rows.append(jnp.concatenate(z_heads, axis=1))              # (P, H*Dh)
    z_flat = jnp.concatenate(z_rows, axis=0) if Bt > 1 else z_rows[0]

    # ---- fused output projection + residual --------------------------------
    attn_out = jnp.dot(z_flat.astype(cdt), wo_ref[...],
                       preferred_element_type=jnp.float32)           # (Bt*P, D)
    resid_mid = x + attn_out

    # ---- MLP + residual -----------------------------------------------------
    pre = jnp.dot(resid_mid.astype(cdt), win_ref[...],
                  preferred_element_type=jnp.float32) + bin_ref[...]  # (Bt*P, M)
    if act_type == 'ReLU':
        post = jnp.maximum(pre, 0.0)
    else:  # GeLU (exact erf form, matching torch.nn.functional.gelu default)
        post = jax.nn.gelu(pre, approximate=False)
    mlp_out = jnp.dot(post.astype(cdt), wout_ref[...],
                      preferred_element_type=jnp.float32) + bout_ref[...]

    o_ref[...] = (resid_mid + mlp_out).astype(o_ref.dtype)


def prepare_params(params, *, compute_dtype=jnp.bfloat16):
    """One-time weight packing — call at parameter load, not per forward."""
    W_Q, W_K, W_V = params['W_Q'], params['W_K'], params['W_V']
    W_O, W_in, b_in = params['W_O'], params['W_in'], params['b_in']
    W_out, b_out = params['W_out'], params['b_out']
    H, Dh, D = W_Q.shape
    M = W_in.shape[0]

    def to_wide(w):  # (H, Dh, D) -> (D, H*Dh), head-major columns
        return jnp.transpose(w, (2, 0, 1)).reshape(D, H * Dh)

    scale = 1.0 / math.sqrt(Dh)                 # fold softmax scale into W_Q
    wqkv = jnp.concatenate(
        [to_wide(W_Q) * scale, to_wide(W_K), to_wide(W_V)], axis=1
    ).astype(compute_dtype)                     # (D, 3*H*Dh)

    return {
        'wqkv': wqkv,
        'wo': W_O.T.astype(compute_dtype),      # (H*Dh, D), head-major rows
        'win': W_in.T.astype(compute_dtype),    # (D, M)
        'wout': W_out.T.astype(compute_dtype),  # (M, D)
        'b_in': b_in.reshape(1, M).astype(jnp.float32),
        'b_out': b_out.reshape(1, D).astype(jnp.float32),
        'num_heads': H, 'd_head': Dh,
    }


def transformer_block(x, prepped, *, act_type='ReLU', batch_tile=None):
    """x: (B, P, D) float32.  prepped: output of prepare_params."""
    B, P, D = x.shape
    H, Dh = prepped['num_heads'], prepped['d_head']

    if batch_tile is None:
        # enough rows per grid step to fill MXU rows / amortize step overhead
        batch_tile = 1
        for cand in range(min(B, max(1, 512 // P)), 0, -1):
            if B % cand == 0:
                batch_tile = cand
                break
    assert B % batch_tile == 0
    rows = batch_tile * P

    kernel = functools.partial(
        transformer_block_kernel, batch_tile=batch_tile, seq_len=P,
        num_heads=H, d_head=Dh, act_type=act_type)

    def resident(a):  # whole-array, grid-invariant weight block
        zeros = (0,) * a.ndim
        return pl.BlockSpec(a.shape, lambda i: zeros)

    x2d = x.reshape(B * P, D)
    out2d = pl.pallas_call(
        kernel,
        out_shape=jax.ShapeDtypeStruct((B * P, D), x.dtype),
        grid=(B // batch_tile,),
        in_specs=[
            pl.BlockSpec((rows, D), lambda i: (i, 0)),   # batch-tile of rows
            resident(prepped['wqkv']), resident(prepped['wo']),
            resident(prepped['win']), resident(prepped['b_in']),
            resident(prepped['wout']), resident(prepped['b_out']),
        ],
        out_specs=pl.BlockSpec((rows, D), lambda i: (i, 0)),
        compiler_params=pltpu.CompilerParams(
            dimension_semantics=("parallel",),           # v7x: 2 TCs share batch
            vmem_limit_bytes=32 * 1024 * 1024),
    )(x2d, prepped['wqkv'], prepped['wo'], prepped['win'], prepped['b_in'],
      prepped['wout'], prepped['b_out'])
    return out2d.reshape(B, P, D)


def reference_block(x, params, *, act_type='ReLU'):
    """Pure-JAX (f32) transcription of the PyTorch forward for verification."""
    W_Q, W_K, W_V = params['W_Q'], params['W_K'], params['W_V']
    W_O, W_in, b_in = params['W_O'], params['W_in'], params['b_in']
    W_out, b_out = params['W_out'], params['b_out']
    d_head = W_Q.shape[1]
    P = x.shape[1]

    k = jnp.einsum('ihd,bpd->biph', W_K, x)
    q = jnp.einsum('ihd,bpd->biph', W_Q, x)
    v = jnp.einsum('ihd,bpd->biph', W_V, x)
    scores = jnp.einsum('biph,biqh->biqp', k, q)
    mask = jnp.tril(jnp.ones((P, P), dtype=x.dtype))
    masked = scores * mask - 1e10 * (1 - mask)
    attn = jax.nn.softmax(masked / math.sqrt(d_head), axis=-1)
    z = jnp.einsum('biph,biqp->biqh', v, attn)
    B, H, P_, Dh = z.shape
    z_flat = jnp.transpose(z, (0, 2, 1, 3)).reshape(B, P_, H * Dh)
    attn_out = jnp.einsum('df,bqf->bqd', W_O, z_flat)
    x_mid = x + attn_out

    pre = jnp.einsum('md,bpd->bpm', W_in, x_mid) + b_in
    post = jnp.maximum(pre, 0.0) if act_type == 'ReLU' else jax.nn.gelu(
        pre, approximate=False)
    mlp_out = jnp.einsum('dm,bpm->bpd', W_out, post) + b_out
    return x_mid + mlp_out


if __name__ == "__main__":
    # small config consistent with the module's __init__ (n_ctx = 8)
    B, P = 2, 8            # batch, seq
    D, M = 32, 64          # d_model, d_mlp
    H, Dh = 4, 8           # num_heads, d_head
    act_type = 'ReLU'

    key = jax.random.PRNGKey(0)
    ks = jax.random.split(key, 7)
    params = {
        'W_Q':  jax.random.normal(ks[0], (H, Dh, D), jnp.float32) / math.sqrt(D),
        'W_K':  jax.random.normal(ks[1], (H, Dh, D), jnp.float32) / math.sqrt(D),
        'W_V':  jax.random.normal(ks[2], (H, Dh, D), jnp.float32) / math.sqrt(D),
        'W_O':  jax.random.normal(ks[3], (D, H * Dh), jnp.float32) / math.sqrt(D),
        'W_in': jax.random.normal(ks[4], (M, D), jnp.float32) / math.sqrt(D),
        'b_in': jnp.zeros((M,), jnp.float32),
        'W_out': jax.random.normal(ks[5], (D, M), jnp.float32) / math.sqrt(D),
        'b_out': jnp.zeros((D,), jnp.float32),
    }
    x = jax.random.normal(ks[6], (B, P, D), jnp.float32)

    prepped = prepare_params(params)          # once, outside the per-call path
    out = transformer_block(x, prepped, act_type=act_type)
    out = jax.block_until_ready(out)

    ref = reference_block(x, params, act_type=act_type)
    assert out.shape == (B, P, D)
    # bf16 matmul inputs -> relaxed tolerance vs. the pure-f32 reference
    assert jnp.allclose(out, ref, rtol=5e-2, atol=1e-1), \
        f"max abs diff {jnp.max(jnp.abs(out - ref))}"

    print("KERNEL_OK")
</pallas_src>

<mosaic_0001>
module attributes {stable_mosaic.version = 11 : i64} {
  func.func @transformer_block_kernel(%arg0: i32, %arg1: memref<16x32xf32, #tpu.memory_space<vmem>>, %arg2: memref<32x96xbf16, #tpu.memory_space<vmem>>, %arg3: memref<32x32xbf16, #tpu.memory_space<vmem>>, %arg4: memref<32x64xbf16, #tpu.memory_space<vmem>>, %arg5: memref<1x64xf32, #tpu.memory_space<vmem>>, %arg6: memref<64x32xbf16, #tpu.memory_space<vmem>>, %arg7: memref<1x32xf32, #tpu.memory_space<vmem>>, %arg8: memref<16x32xf32, #tpu.memory_space<vmem>>) attributes {dimension_semantics = [#tpu.dimension_semantics<parallel>], iteration_bounds = array<i64: 1>, scalar_prefetch = 0 : i64, scratch_operands = 0 : i64, tpu.core_type = #tpu.core_type<tc>, window_params = [{transform_indices = @transform_0, window_bounds = array<i64: 16, 32>}, {pipeline_mode = #tpu.pipeline_mode<synchronous>, transform_indices = @transform_1, window_bounds = array<i64: 32, 96>}, {pipeline_mode = #tpu.pipeline_mode<synchronous>, transform_indices = @transform_2, window_bounds = array<i64: 32, 32>}, {pipeline_mode = #tpu.pipeline_mode<synchronous>, transform_indices = @transform_3, window_bounds = array<i64: 32, 64>}, {pipeline_mode = #tpu.pipeline_mode<synchronous>, transform_indices = @transform_4, window_bounds = array<i64: 1, 64>}, {pipeline_mode = #tpu.pipeline_mode<synchronous>, transform_indices = @transform_5, window_bounds = array<i64: 64, 32>}, {pipeline_mode = #tpu.pipeline_mode<synchronous>, transform_indices = @transform_6, window_bounds = array<i64: 1, 32>}, {transform_indices = @transform_7, window_bounds = array<i64: 16, 32>}]} {
    %c0 = arith.constant 0 : index
    %c0_0 = arith.constant 0 : index
    %0 = vector.load %arg1[%c0, %c0_0] : memref<16x32xf32, #tpu.memory_space<vmem>>, vector<16x32xf32>
    %1 = arith.truncf %0 : vector<16x32xf32> to vector<16x32xbf16>
    %c0_1 = arith.constant 0 : index
    %c0_2 = arith.constant 0 : index
    %2 = vector.load %arg2[%c0_1, %c0_2] : memref<32x96xbf16, #tpu.memory_space<vmem>>, vector<32x96xbf16>
    %cst = arith.constant dense<0.000000e+00> : vector<16x96xf32>
    %3 = tpu.matmul %1, %2, %cst {dimension_numbers = #tpu.dot_dimension_numbers<[1], [0], [0], [1], [0, 0, 1, 1], [], []>} : vector<16x32xbf16>, vector<32x96xbf16>, vector<16x96xf32> -> vector<16x96xf32>
    %4 = tpu.iota {dimensions = array<i32: 0>} : vector<8x8xi32>
    %5 = tpu.iota {dimensions = array<i32: 1>} : vector<8x8xi32>
    %6 = arith.cmpi sle, %5, %4 : vector<8x8xi32>
    %7 = vector.extract_strided_slice %3 {offsets = [0, 0], sizes = [8, 8], strides = [1, 1]} : vector<16x96xf32> to vector<8x8xf32>
    %8 = vector.extract_strided_slice %3 {offsets = [0, 32], sizes = [8, 8], strides = [1, 1]} : vector<16x96xf32> to vector<8x8xf32>
    %9 = vector.extract_strided_slice %3 {offsets = [0, 64], sizes = [8, 8], strides = [1, 1]} : vector<16x96xf32> to vector<8x8xf32>
    %10 = arith.truncf %7 : vector<8x8xf32> to vector<8x8xbf16>
    %11 = arith.truncf %8 : vector<8x8xf32> to vector<8x8xbf16>
    %cst_3 = arith.constant dense<0.000000e+00> : vector<8x8xf32>
    %12 = tpu.matmul %10, %11, %cst_3 {dimension_numbers = #tpu.dot_dimension_numbers<[1], [1], [0], [0], [0, 0, 1, 0], [], []>} : vector<8x8xbf16>, vector<8x8xbf16>, vector<8x8xf32> -> vector<8x8xf32>
    %cst_4 = arith.constant -1.000000e+10 : f32
    %13 = vector.broadcast %cst_4 : f32 to vector<8x8xf32>
    %14 = arith.select %6, %12, %13 : vector<8x8xi1>, vector<8x8xf32>
    %cst_5 = arith.constant dense<0xFF800000> : vector<8xf32>
    %15 = vector.multi_reduction <maximumf>, %14, %cst_5 [1] : vector<8x8xf32> to vector<8xf32>
    %16 = vector.shape_cast %15 : vector<8xf32> to vector<8x1xf32>
    %17 = vector.broadcast %16 : vector<8x1xf32> to vector<8x8xf32>
    %18 = arith.subf %14, %17 : vector<8x8xf32>
    %19 = math.exp %18 : vector<8x8xf32>
    %cst_6 = arith.constant dense<0.000000e+00> : vector<8xf32>
    %20 = vector.multi_reduction <add>, %19, %cst_6 [1] : vector<8x8xf32> to vector<8xf32>
    %21 = vector.shape_cast %20 : vector<8xf32> to vector<8x1xf32>
    %22 = tpu.reciprocal %21 {approx = true} : vector<8x1xf32> -> vector<8x1xf32>
    %23 = vector.broadcast %22 : vector<8x1xf32> to vector<8x8xf32>
    %24 = arith.mulf %19, %23 : vector<8x8xf32>
    %25 = arith.truncf %24 : vector<8x8xf32> to vector<8x8xbf16>
    %26 = arith.truncf %9 : vector<8x8xf32> to vector<8x8xbf16>
    %cst_7 = arith.constant dense<0.000000e+00> : vector<8x8xf32>
    %27 = tpu.matmul %25, %26, %cst_7 {dimension_numbers = #tpu.dot_dimension_numbers<[1], [0], [0], [1], [0, 0, 1, 1], [], []>} : vector<8x8xbf16>, vector<8x8xbf16>, vector<8x8xf32> -> vector<8x8xf32>
    %28 = vector.extract_strided_slice %3 {offsets = [0, 8], sizes = [8, 8], strides = [1, 1]} : vector<16x96xf32> to vector<8x8xf32>
    %29 = vector.extract_strided_slice %3 {offsets = [0, 40], sizes = [8, 8], strides = [1, 1]} : vector<16x96xf32> to vector<8x8xf32>
    %30 = vector.extract_strided_slice %3 {offsets = [0, 72], sizes = [8, 8], strides = [1, 1]} : vector<16x96xf32> to vector<8x8xf32>
    %31 = arith.truncf %28 : vector<8x8xf32> to vector<8x8xbf16>
    %32 = arith.truncf %29 : vector<8x8xf32> to vector<8x8xbf16>
    %cst_8 = arith.constant dense<0.000000e+00> : vector<8x8xf32>
    %33 = tpu.matmul %31, %32, %cst_8 {dimension_numbers = #tpu.dot_dimension_numbers<[1], [1], [0], [0], [0, 0, 1, 0], [], []>} : vector<8x8xbf16>, vector<8x8xbf16>, vector<8x8xf32> -> vector<8x8xf32>
    %cst_9 = arith.constant -1.000000e+10 : f32
    %34 = vector.broadcast %cst_9 : f32 to vector<8x8xf32>
    %35 = arith.select %6, %33, %34 : vector<8x8xi1>, vector<8x8xf32>
    %cst_10 = arith.constant dense<0xFF800000> : vector<8xf32>
    %36 = vector.multi_reduction <maximumf>, %35, %cst_10 [1] : vector<8x8xf32> to vector<8xf32>
    %37 = vector.shape_cast %36 : vector<8xf32> to vector<8x1xf32>
    %38 = vector.broadcast %37 : vector<8x1xf32> to vector<8x8xf32>
    %39 = arith.subf %35, %38 : vector<8x8xf32>
    %40 = math.exp %39 : vector<8x8xf32>
    %cst_11 = arith.constant dense<0.000000e+00> : vector<8xf32>
    %41 = vector.multi_reduction <add>, %40, %cst_11 [1] : vector<8x8xf32> to vector<8xf32>
    %42 = vector.shape_cast %41 : vector<8xf32> to vector<8x1xf32>
    %43 = tpu.reciprocal %42 {approx = true} : vector<8x1xf32> -> vector<8x1xf32>
    %44 = vector.broadcast %43 : vector<8x1xf32> to vector<8x8xf32>
    %45 = arith.mulf %40, %44 : vector<8x8xf32>
    %46 = arith.truncf %45 : vector<8x8xf32> to vector<8x8xbf16>
    %47 = arith.truncf %30 : vector<8x8xf32> to vector<8x8xbf16>
    %cst_12 = arith.constant dense<0.000000e+00> : vector<8x8xf32>
    %48 = tpu.matmul %46, %47, %cst_12 {dimension_numbers = #tpu.dot_dimension_numbers<[1], [0], [0], [1], [0, 0, 1, 1], [], []>} : vector<8x8xbf16>, vector<8x8xbf16>, vector<8x8xf32> -> vector<8x8xf32>
    %49 = vector.extract_strided_slice %3 {offsets = [0, 16], sizes = [8, 8], strides = [1, 1]} : vector<16x96xf32> to vector<8x8xf32>
    %50 = vector.extract_strided_slice %3 {offsets = [0, 48], sizes = [8, 8], strides = [1, 1]} : vector<16x96xf32> to vector<8x8xf32>
    %51 = vector.extract_strided_slice %3 {offsets = [0, 80], sizes = [8, 8], strides = [1, 1]} : vector<16x96xf32> to vector<8x8xf32>
    %52 = arith.truncf %49 : vector<8x8xf32> to vector<8x8xbf16>
    %53 = arith.truncf %50 : vector<8x8xf32> to vector<8x8xbf16>
    %cst_13 = arith.constant dense<0.000000e+00> : vector<8x8xf32>
    %54 = tpu.matmul %52, %53, %cst_13 {dimension_numbers = #tpu.dot_dimension_numbers<[1], [1], [0], [0], [0, 0, 1, 0], [], []>} : vector<8x8xbf16>, vector<8x8xbf16>, vector<8x8xf32> -> vector<8x8xf32>
    %cst_14 = arith.constant -1.000000e+10 : f32
    %55 = vector.broadcast %cst_14 : f32 to vector<8x8xf32>
    %56 = arith.select %6, %54, %55 : vector<8x8xi1>, vector<8x8xf32>
    %cst_15 = arith.constant dense<0xFF800000> : vector<8xf32>
    %57 = vector.multi_reduction <maximumf>, %56, %cst_15 [1] : vector<8x8xf32> to vector<8xf32>
    %58 = vector.shape_cast %57 : vector<8xf32> to vector<8x1xf32>
    %59 = vector.broadcast %58 : vector<8x1xf32> to vector<8x8xf32>
    %60 = arith.subf %56, %59 : vector<8x8xf32>
    %61 = math.exp %60 : vector<8x8xf32>
    %cst_16 = arith.constant dense<0.000000e+00> : vector<8xf32>
    %62 = vector.multi_reduction <add>, %61, %cst_16 [1] : vector<8x8xf32> to vector<8xf32>
    %63 = vector.shape_cast %62 : vector<8xf32> to vector<8x1xf32>
    %64 = tpu.reciprocal %63 {approx = true} : vector<8x1xf32> -> vector<8x1xf32>
    %65 = vector.broadcast %64 : vector<8x1xf32> to vector<8x8xf32>
    %66 = arith.mulf %61, %65 : vector<8x8xf32>
    %67 = arith.truncf %66 : vector<8x8xf32> to vector<8x8xbf16>
    %68 = arith.truncf %51 : vector<8x8xf32> to vector<8x8xbf16>
    %cst_17 = arith.constant dense<0.000000e+00> : vector<8x8xf32>
    %69 = tpu.matmul %67, %68, %cst_17 {dimension_numbers = #tpu.dot_dimension_numbers<[1], [0], [0], [1], [0, 0, 1, 1], [], []>} : vector<8x8xbf16>, vector<8x8xbf16>, vector<8x8xf32> -> vector<8x8xf32>
    %70 = vector.extract_strided_slice %3 {offsets = [0, 24], sizes = [8, 8], strides = [1, 1]} : vector<16x96xf32> to vector<8x8xf32>
    %71 = vector.extract_strided_slice %3 {offsets = [0, 56], sizes = [8, 8], strides = [1, 1]} : vector<16x96xf32> to vector<8x8xf32>
    %72 = vector.extract_strided_slice %3 {offsets = [0, 88], sizes = [8, 8], strides = [1, 1]} : vector<16x96xf32> to vector<8x8xf32>
    %73 = arith.truncf %70 : vector<8x8xf32> to vector<8x8xbf16>
    %74 = arith.truncf %71 : vector<8x8xf32> to vector<8x8xbf16>
    %cst_18 = arith.constant dense<0.000000e+00> : vector<8x8xf32>
    %75 = tpu.matmul %73, %74, %cst_18 {dimension_numbers = #tpu.dot_dimension_numbers<[1], [1], [0], [0], [0, 0, 1, 0], [], []>} : vector<8x8xbf16>, vector<8x8xbf16>, vector<8x8xf32> -> vector<8x8xf32>
    %cst_19 = arith.constant -1.000000e+10 : f32
    %76 = vector.broadcast %cst_19 : f32 to vector<8x8xf32>
    %77 = arith.select %6, %75, %76 : vector<8x8xi1>, vector<8x8xf32>
    %cst_20 = arith.constant dense<0xFF800000> : vector<8xf32>
    %78 = vector.multi_reduction <maximumf>, %77, %cst_20 [1] : vector<8x8xf32> to vector<8xf32>
    %79 = vector.shape_cast %78 : vector<8xf32> to vector<8x1xf32>
    %80 = vector.broadcast %79 : vector<8x1xf32> to vector<8x8xf32>
    %81 = arith.subf %77, %80 : vector<8x8xf32>
    %82 = math.exp %81 : vector<8x8xf32>
    %cst_21 = arith.constant dense<0.000000e+00> : vector<8xf32>
    %83 = vector.multi_reduction <add>, %82, %cst_21 [1] : vector<8x8xf32> to vector<8xf32>
    %84 = vector.shape_cast %83 : vector<8xf32> to vector<8x1xf32>
    %85 = tpu.reciprocal %84 {approx = true} : vector<8x1xf32> -> vector<8x1xf32>
    %86 = vector.broadcast %85 : vector<8x1xf32> to vector<8x8xf32>
    %87 = arith.mulf %82, %86 : vector<8x8xf32>
    %88 = arith.truncf %87 : vector<8x8xf32> to vector<8x8xbf16>
    %89 = arith.truncf %72 : vector<8x8xf32> to vector<8x8xbf16>
    %cst_22 = arith.constant dense<0.000000e+00> : vector<8x8xf32>
    %90 = tpu.matmul %88, %89, %cst_22 {dimension_numbers = #tpu.dot_dimension_numbers<[1], [0], [0], [1], [0, 0, 1, 1], [], []>} : vector<8x8xbf16>, vector<8x8xbf16>, vector<8x8xf32> -> vector<8x8xf32>
    %91 = tpu.concatenate %27, %48, %69, %90 in 1 : vector<8x8xf32>, vector<8x8xf32>, vector<8x8xf32>, vector<8x8xf32> -> vector<8x32xf32>
    %92 = vector.extract_strided_slice %3 {offsets = [8, 0], sizes = [8, 8], strides = [1, 1]} : vector<16x96xf32> to vector<8x8xf32>
    %93 = vector.extract_strided_slice %3 {offsets = [8, 32], sizes = [8, 8], strides = [1, 1]} : vector<16x96xf32> to vector<8x8xf32>
    %94 = vector.extract_strided_slice %3 {offsets = [8, 64], sizes = [8, 8], strides = [1, 1]} : vector<16x96xf32> to vector<8x8xf32>
    %95 = arith.truncf %92 : vector<8x8xf32> to vector<8x8xbf16>
    %96 = arith.truncf %93 : vector<8x8xf32> to vector<8x8xbf16>
    %cst_23 = arith.constant dense<0.000000e+00> : vector<8x8xf32>
    %97 = tpu.matmul %95, %96, %cst_23 {dimension_numbers = #tpu.dot_dimension_numbers<[1], [1], [0], [0], [0, 0, 1, 0], [], []>} : vector<8x8xbf16>, vector<8x8xbf16>, vector<8x8xf32> -> vector<8x8xf32>
    %cst_24 = arith.constant -1.000000e+10 : f32
    %98 = vector.broadcast %cst_24 : f32 to vector<8x8xf32>
    %99 = arith.select %6, %97, %98 : vector<8x8xi1>, vector<8x8xf32>
    %cst_25 = arith.constant dense<0xFF800000> : vector<8xf32>
    %100 = vector.multi_reduction <maximumf>, %99, %cst_25 [1] : vector<8x8xf32> to vector<8xf32>
    %101 = vector.shape_cast %100 : vector<8xf32> to vector<8x1xf32>
    %102 = vector.broadcast %101 : vector<8x1xf32> to vector<8x8xf32>
    %103 = arith.subf %99, %102 : vector<8x8xf32>
    %104 = math.exp %103 : vector<8x8xf32>
    %cst_26 = arith.constant dense<0.000000e+00> : vector<8xf32>
    %105 = vector.multi_reduction <add>, %104, %cst_26 [1] : vector<8x8xf32> to vector<8xf32>
    %106 = vector.shape_cast %105 : vector<8xf32> to vector<8x1xf32>
    %107 = tpu.reciprocal %106 {approx = true} : vector<8x1xf32> -> vector<8x1xf32>
    %108 = vector.broadcast %107 : vector<8x1xf32> to vector<8x8xf32>
    %109 = arith.mulf %104, %108 : vector<8x8xf32>
    %110 = arith.truncf %109 : vector<8x8xf32> to vector<8x8xbf16>
    %111 = arith.truncf %94 : vector<8x8xf32> to vector<8x8xbf16>
    %cst_27 = arith.constant dense<0.000000e+00> : vector<8x8xf32>
    %112 = tpu.matmul %110, %111, %cst_27 {dimension_numbers = #tpu.dot_dimension_numbers<[1], [0], [0], [1], [0, 0, 1, 1], [], []>} : vector<8x8xbf16>, vector<8x8xbf16>, vector<8x8xf32> -> vector<8x8xf32>
    %113 = vector.extract_strided_slice %3 {offsets = [8, 8], sizes = [8, 8], strides = [1, 1]} : vector<16x96xf32> to vector<8x8xf32>
    %114 = vector.extract_strided_slice %3 {offsets = [8, 40], sizes = [8, 8], strides = [1, 1]} : vector<16x96xf32> to vector<8x8xf32>
    %115 = vector.extract_strided_slice %3 {offsets = [8, 72], sizes = [8, 8], strides = [1, 1]} : vector<16x96xf32> to vector<8x8xf32>
    %116 = arith.truncf %113 : vector<8x8xf32> to vector<8x8xbf16>
    %117 = arith.truncf %114 : vector<8x8xf32> to vector<8x8xbf16>
    %cst_28 = arith.constant dense<0.000000e+00> : vector<8x8xf32>
    %118 = tpu.matmul %116, %117, %cst_28 {dimension_numbers = #tpu.dot_dimension_numbers<[1], [1], [0], [0], [0, 0, 1, 0], [], []>} : vector<8x8xbf16>, vector<8x8xbf16>, vector<8x8xf32> -> vector<8x8xf32>
    %cst_29 = arith.constant -1.000000e+10 : f32
    %119 = vector.broadcast %cst_29 : f32 to vector<8x8xf32>
    %120 = arith.select %6, %118, %119 : vector<8x8xi1>, vector<8x8xf32>
    %cst_30 = arith.constant dense<0xFF800000> : vector<8xf32>
    %121 = vector.multi_reduction <maximumf>, %120, %cst_30 [1] : vector<8x8xf32> to vector<8xf32>
    %122 = vector.shape_cast %121 : vector<8xf32> to vector<8x1xf32>
    %123 = vector.broadcast %122 : vector<8x1xf32> to vector<8x8xf32>
    %124 = arith.subf %120, %123 : vector<8x8xf32>
    %125 = math.exp %124 : vector<8x8xf32>
    %cst_31 = arith.constant dense<0.000000e+00> : vector<8xf32>
    %126 = vector.multi_reduction <add>, %125, %cst_31 [1] : vector<8x8xf32> to vector<8xf32>
    %127 = vector.shape_cast %126 : vector<8xf32> to vector<8x1xf32>
    %128 = tpu.reciprocal %127 {approx = true} : vector<8x1xf32> -> vector<8x1xf32>
    %129 = vector.broadcast %128 : vector<8x1xf32> to vector<8x8xf32>
    %130 = arith.mulf %125, %129 : vector<8x8xf32>
    %131 = arith.truncf %130 : vector<8x8xf32> to vector<8x8xbf16>
    %132 = arith.truncf %115 : vector<8x8xf32> to vector<8x8xbf16>
    %cst_32 = arith.constant dense<0.000000e+00> : vector<8x8xf32>
    %133 = tpu.matmul %131, %132, %cst_32 {dimension_numbers = #tpu.dot_dimension_numbers<[1], [0], [0], [1], [0, 0, 1, 1], [], []>} : vector<8x8xbf16>, vector<8x8xbf16>, vector<8x8xf32> -> vector<8x8xf32>
    %134 = vector.extract_strided_slice %3 {offsets = [8, 16], sizes = [8, 8], strides = [1, 1]} : vector<16x96xf32> to vector<8x8xf32>
    %135 = vector.extract_strided_slice %3 {offsets = [8, 48], sizes = [8, 8], strides = [1, 1]} : vector<16x96xf32> to vector<8x8xf32>
    %136 = vector.extract_strided_slice %3 {offsets = [8, 80], sizes = [8, 8], strides = [1, 1]} : vector<16x96xf32> to vector<8x8xf32>
    %137 = arith.truncf %134 : vector<8x8xf32> to vector<8x8xbf16>
    %138 = arith.truncf %135 : vector<8x8xf32> to vector<8x8xbf16>
    %cst_33 = arith.constant dense<0.000000e+00> : vector<8x8xf32>
    %139 = tpu.matmul %137, %138, %cst_33 {dimension_numbers = #tpu.dot_dimension_numbers<[1], [1], [0], [0], [0, 0, 1, 0], [], []>} : vector<8x8xbf16>, vector<8x8xbf16>, vector<8x8xf32> -> vector<8x8xf32>
    %cst_34 = arith.constant -1.000000e+10 : f32
    %140 = vector.broadcast %cst_34 : f32 to vector<8x8xf32>
    %141 = arith.select %6, %139, %140 : vector<8x8xi1>, vector<8x8xf32>
    %cst_35 = arith.constant dense<0xFF800000> : vector<8xf32>
    %142 = vector.multi_reduction <maximumf>, %141, %cst_35 [1] : vector<8x8xf32> to vector<8xf32>
    %143 = vector.shape_cast %142 : vector<8xf32> to vector<8x1xf32>
    %144 = vector.broadcast %143 : vector<8x1xf32> to vector<8x8xf32>
    %145 = arith.subf %141, %144 : vector<8x8xf32>
    %146 = math.exp %145 : vector<8x8xf32>
    %cst_36 = arith.constant dense<0.000000e+00> : vector<8xf32>
    %147 = vector.multi_reduction <add>, %146, %cst_36 [1] : vector<8x8xf32> to vector<8xf32>
    %148 = vector.shape_cast %147 : vector<8xf32> to vector<8x1xf32>
    %149 = tpu.reciprocal %148 {approx = true} : vector<8x1xf32> -> vector<8x1xf32>
    %150 = vector.broadcast %149 : vector<8x1xf32> to vector<8x8xf32>
    %151 = arith.mulf %146, %150 : vector<8x8xf32>
    %152 = arith.truncf %151 : vector<8x8xf32> to vector<8x8xbf16>
    %153 = arith.truncf %136 : vector<8x8xf32> to vector<8x8xbf16>
    %cst_37 = arith.constant dense<0.000000e+00> : vector<8x8xf32>
    %154 = tpu.matmul %152, %153, %cst_37 {dimension_numbers = #tpu.dot_dimension_numbers<[1], [0], [0], [1], [0, 0, 1, 1], [], []>} : vector<8x8xbf16>, vector<8x8xbf16>, vector<8x8xf32> -> vector<8x8xf32>
    %155 = vector.extract_strided_slice %3 {offsets = [8, 24], sizes = [8, 8], strides = [1, 1]} : vector<16x96xf32> to vector<8x8xf32>
    %156 = vector.extract_strided_slice %3 {offsets = [8, 56], sizes = [8, 8], strides = [1, 1]} : vector<16x96xf32> to vector<8x8xf32>
    %157 = vector.extract_strided_slice %3 {offsets = [8, 88], sizes = [8, 8], strides = [1, 1]} : vector<16x96xf32> to vector<8x8xf32>
    %158 = arith.truncf %155 : vector<8x8xf32> to vector<8x8xbf16>
    %159 = arith.truncf %156 : vector<8x8xf32> to vector<8x8xbf16>
    %cst_38 = arith.constant dense<0.000000e+00> : vector<8x8xf32>
    %160 = tpu.matmul %158, %159, %cst_38 {dimension_numbers = #tpu.dot_dimension_numbers<[1], [1], [0], [0], [0, 0, 1, 0], [], []>} : vector<8x8xbf16>, vector<8x8xbf16>, vector<8x8xf32> -> vector<8x8xf32>
    %cst_39 = arith.constant -1.000000e+10 : f32
    %161 = vector.broadcast %cst_39 : f32 to vector<8x8xf32>
    %162 = arith.select %6, %160, %161 : vector<8x8xi1>, vector<8x8xf32>
    %cst_40 = arith.constant dense<0xFF800000> : vector<8xf32>
    %163 = vector.multi_reduction <maximumf>, %162, %cst_40 [1] : vector<8x8xf32> to vector<8xf32>
    %164 = vector.shape_cast %163 : vector<8xf32> to vector<8x1xf32>
    %165 = vector.broadcast %164 : vector<8x1xf32> to vector<8x8xf32>
    %166 = arith.subf %162, %165 : vector<8x8xf32>
    %167 = math.exp %166 : vector<8x8xf32>
    %cst_41 = arith.constant dense<0.000000e+00> : vector<8xf32>
    %168 = vector.multi_reduction <add>, %167, %cst_41 [1] : vector<8x8xf32> to vector<8xf32>
    %169 = vector.shape_cast %168 : vector<8xf32> to vector<8x1xf32>
    %170 = tpu.reciprocal %169 {approx = true} : vector<8x1xf32> -> vector<8x1xf32>
    %171 = vector.broadcast %170 : vector<8x1xf32> to vector<8x8xf32>
    %172 = arith.mulf %167, %171 : vector<8x8xf32>
    %173 = arith.truncf %172 : vector<8x8xf32> to vector<8x8xbf16>
    %174 = arith.truncf %157 : vector<8x8xf32> to vector<8x8xbf16>
    %cst_42 = arith.constant dense<0.000000e+00> : vector<8x8xf32>
    %175 = tpu.matmul %173, %174, %cst_42 {dimension_numbers = #tpu.dot_dimension_numbers<[1], [0], [0], [1], [0, 0, 1, 1], [], []>} : vector<8x8xbf16>, vector<8x8xbf16>, vector<8x8xf32> -> vector<8x8xf32>
    %176 = tpu.concatenate %112, %133, %154, %175 in 1 : vector<8x8xf32>, vector<8x8xf32>, vector<8x8xf32>, vector<8x8xf32> -> vector<8x32xf32>
    %177 = tpu.concatenate %91, %176 in 0 : vector<8x32xf32>, vector<8x32xf32> -> vector<16x32xf32>
    %178 = arith.truncf %177 : vector<16x32xf32> to vector<16x32xbf16>
    %c0_43 = arith.constant 0 : index
    %c0_44 = arith.constant 0 : index
    %179 = vector.load %arg3[%c0_43, %c0_44] : memref<32x32xbf16, #tpu.memory_space<vmem>>, vector<32x32xbf16>
    %cst_45 = arith.constant dense<0.000000e+00> : vector<16x32xf32>
    %180 = tpu.matmul %178, %179, %cst_45 {dimension_numbers = #tpu.dot_dimension_numbers<[1], [0], [0], [1], [0, 0, 1, 1], [], []>} : vector<16x32xbf16>, vector<32x32xbf16>, vector<16x32xf32> -> vector<16x32xf32>
    %181 = arith.addf %0, %180 : vector<16x32xf32>
    %182 = arith.truncf %181 : vector<16x32xf32> to vector<16x32xbf16>
    %c0_46 = arith.constant 0 : index
    %c0_47 = arith.constant 0 : index
    %183 = vector.load %arg4[%c0_46, %c0_47] : memref<32x64xbf16, #tpu.memory_space<vmem>>, vector<32x64xbf16>
    %cst_48 = arith.constant dense<0.000000e+00> : vector<16x64xf32>
    %184 = tpu.matmul %182, %183, %cst_48 {dimension_numbers = #tpu.dot_dimension_numbers<[1], [0], [0], [1], [0, 0, 1, 1], [], []>} : vector<16x32xbf16>, vector<32x64xbf16>, vector<16x64xf32> -> vector<16x64xf32>
    %c0_49 = arith.constant 0 : index
    %c0_50 = arith.constant 0 : index
    %185 = vector.load %arg5[%c0_49, %c0_50] : memref<1x64xf32, #tpu.memory_space<vmem>>, vector<1x64xf32>
    %186 = vector.broadcast %185 : vector<1x64xf32> to vector<16x64xf32>
    %187 = arith.addf %184, %186 : vector<16x64xf32>
    %cst_51 = arith.constant 0.000000e+00 : f32
    %188 = vector.broadcast %cst_51 : f32 to vector<16x64xf32>
    %189 = arith.maximumf %187, %188 : vector<16x64xf32>
    %190 = arith.truncf %189 : vector<16x64xf32> to vector<16x64xbf16>
    %c0_52 = arith.constant 0 : index
    %c0_53 = arith.constant 0 : index
    %191 = vector.load %arg6[%c0_52, %c0_53] : memref<64x32xbf16, #tpu.memory_space<vmem>>, vector<64x32xbf16>
    %cst_54 = arith.constant dense<0.000000e+00> : vector<16x32xf32>
    %192 = tpu.matmul %190, %191, %cst_54 {dimension_numbers = #tpu.dot_dimension_numbers<[1], [0], [0], [1], [0, 0, 1, 1], [], []>} : vector<16x64xbf16>, vector<64x32xbf16>, vector<16x32xf32> -> vector<16x32xf32>
    %c0_55 = arith.constant 0 : index
    %c0_56 = arith.constant 0 : index
    %193 = vector.load %arg7[%c0_55, %c0_56] : memref<1x32xf32, #tpu.memory_space<vmem>>, vector<1x32xf32>
    %194 = vector.broadcast %193 : vector<1x32xf32> to vector<16x32xf32>
    %195 = arith.addf %192, %194 : vector<16x32xf32>
    %196 = arith.addf %181, %195 : vector<16x32xf32>
    %c0_57 = arith.constant 0 : index
    %c0_58 = arith.constant 0 : index
    %197 = vector.load %arg8[%c0_57, %c0_58] : memref<16x32xf32, #tpu.memory_space<vmem>>, vector<16x32xf32>
    tpu.vector_store %arg8[%c0_57, %c0_58], %196 {strides = array<i32>} : memref<16x32xf32, #tpu.memory_space<vmem>>, vector<16x32xf32>,
    return
  }
  func.func @transform_0(%arg0: i32) -> (i32, i32) {
    %c0_i32 = arith.constant 0 : i32
    %c0_i32_0 = arith.constant 0 : i32
    return %arg0, %c0_i32 : i32, i32
  }
  func.func @transform_1(%arg0: i32) -> (i32, i32) {
    %c0_i32 = arith.constant 0 : i32
    %c0_i32_0 = arith.constant 0 : i32
    %c0_i32_1 = arith.constant 0 : i32
    return %c0_i32, %c0_i32_0 : i32, i32
  }
  func.func @transform_2(%arg0: i32) -> (i32, i32) {
    %c0_i32 = arith.constant 0 : i32
    %c0_i32_0 = arith.constant 0 : i32
    %c0_i32_1 = arith.constant 0 : i32
    return %c0_i32, %c0_i32_0 : i32, i32
  }
  func.func @transform_3(%arg0: i32) -> (i32, i32) {
    %c0_i32 = arith.constant 0 : i32
    %c0_i32_0 = arith.constant 0 : i32
    %c0_i32_1 = arith.constant 0 : i32
    return %c0_i32, %c0_i32_0 : i32, i32
  }
  func.func @transform_4(%arg0: i32) -> (i32, i32) {
    %c0_i32 = arith.constant 0 : i32
    %c0_i32_0 = arith.constant 0 : i32
    %c0_i32_1 = arith.constant 0 : i32
    return %c0_i32, %c0_i32_0 : i32, i32
  }
  func.func @transform_5(%arg0: i32) -> (i32, i32) {
    %c0_i32 = arith.constant 0 : i32
    %c0_i32_0 = arith.constant 0 : i32
    %c0_i32_1 = arith.constant 0 : i32
    return %c0_i32, %c0_i32_0 : i32, i32
  }
  func.func @transform_6(%arg0: i32) -> (i32, i32) {
    %c0_i32 = arith.constant 0 : i32
    %c0_i32_0 = arith.constant 0 : i32
    %c0_i32_1 = arith.constant 0 : i32
    return %c0_i32, %c0_i32_0 : i32, i32
  }
  func.func @transform_7(%arg0: i32) -> (i32, i32) {
    %c0_i32 = arith.constant 0 : i32
    %c0_i32_0 = arith.constant 0 : i32
    return %arg0, %c0_i32 : i32, i32
  }
}

</mosaic_0001>

<llo_original>
// kernel: tpu_custom_call.1
$region0: #{tpu_custom_call.1}
  #allocation0 [shape = 'u32[]', space=smem, size = 0x4, offset = 0x4, fixed_abs, tag = 'smem constant byte address 0x4 - core index']
  #allocation1 [shape = 'u32[144,128]{1,0:T(1,128)}', space=vmem, size = 0x12000, scoped, tag = 'internal scratch']
  %s0 = inlined_call_operand.vmem [shape: f32[16,32], index: 0, kind: input, shape index: {}]
  %s1 = inlined_call_operand.vmem [shape: bf16[32,96], index: 1, kind: input, shape index: {}]
  %s2 = inlined_call_operand.vmem [shape: bf16[32,32], index: 2, kind: input, shape index: {}]
  %s3 = inlined_call_operand.hbm [shape: bf16[32,64], index: 3, kind: input, shape index: {}]
  %s4 = inlined_call_operand.vmem [shape: f32[1,64], index: 4, kind: input, shape index: {}]
  %s5 = inlined_call_operand.vmem [shape: bf16[64,32], index: 5, kind: input, shape index: {}]
  %s6 = inlined_call_operand.vmem [shape: f32[1,32], index: 6, kind: input, shape index: {}]
  %s7 = inlined_call_operand.hbm [shape: f32[16,32], index: 7, kind: output, shape index: {}]
  %s8 = sld [smem:[#allocation0]]
  $region42: #{tpu_custom_call.1} parent=0
    _
  %s10 = ssub.s32 1, %s8
  %s11 = scalar_select 0, %s10, %s8
  $region1: #{tpu_custom_call.1} parent=0
    #allocation2 [shape = 'u8[8192]{0}', space=vmem, size = 0x2000, scoped, tag = 'input window, operand 3, single buffered']
    #allocation3 [shape = 's32[1]{0}', space=sflag, size = 0x4, scoped, tag = 'scoped memory for tpu_custom_call.1']
    #allocation4 [shape = 's32[1]{0}', space=sflag, size = 0x4, scoped, tag = 'scoped memory for tpu_custom_call.1']
    #allocation5 [shape = 'u8[8192]{0}', space=vmem, size = 0x2000, scoped, tag = 'output window, operand 0, single buffered']
    %12 = vsyncpa [#allocation3], 0
    %13 = vsyncpa [#allocation4], 0
    // Predicated region
    $region2: #{tpu_custom_call.1} parent=1 // pred_check
      _
    $region3: #{tpu_custom_call.1} parent=1 // pred_check_branch
      %15 = sbr.rel (0) target = $region5
    $region4: #{tpu_custom_call.1} parent=1 // pred_region
      _
    $region5: #{tpu_custom_call.1} parent=1 // pred_fallthru
      _
    // Predicated region
    $region6: #{tpu_custom_call.1} parent=1 // pred_check
      _
    $region7: #{tpu_custom_call.1} parent=1 // pred_check_branch
      %17 = sbr.rel (0) target = $region9
    $region8: #{tpu_custom_call.1} parent=1 // pred_region
      _
    $region9: #{tpu_custom_call.1} parent=1 // pred_fallthru
      _
    // Predicated region
    $region10: #{tpu_custom_call.1} parent=1 // pred_check
      _
    $region11: #{tpu_custom_call.1} parent=1 // pred_check_branch
      %19 = sbr.rel (0) target = $region13
    $region12: #{tpu_custom_call.1} parent=1 // pred_region
      _
    $region13: #{tpu_custom_call.1} parent=1 // pred_fallthru
      _
    // Predicated region
    $region14: #{tpu_custom_call.1} parent=1 // pred_check
      _
    $region15: #{tpu_custom_call.1} parent=1 // pred_check_branch
      %21 = sbr.rel (0) target = $region17
    $region16: #{tpu_custom_call.1} parent=1 // pred_region
      %s23 = ssub.s32 256, 256
      %24 = vsyncadd [#allocation3], %s23
      %s25 = sshll.u32 [#allocation2], 4
      %s26 = int_to_ptr.vmem [resolvable:$true] %s25
      %31 = dma.hbm_to_vmem [thread:$0]  %s3, 256, %s26, [#allocation3], 64, 64, 4
    $region17: #{tpu_custom_call.1} parent=1 // pred_fallthru
      _
    // Predicated region
    $region18: #{tpu_custom_call.1} parent=1 // pred_check
      _
    $region19: #{tpu_custom_call.1} parent=1 // pred_check_branch
      %33 = sbr.rel (0) target = $region21
    $region20: #{tpu_custom_call.1} parent=1 // pred_region
      _
    $region21: #{tpu_custom_call.1} parent=1 // pred_fallthru
      _
    // Predicated region
    $region22: #{tpu_custom_call.1} parent=1 // pred_check
      _
    $region23: #{tpu_custom_call.1} parent=1 // pred_check_branch
      %35 = sbr.rel (0) target = $region25
    $region24: #{tpu_custom_call.1} parent=1 // pred_region
      _
    $region25: #{tpu_custom_call.1} parent=1 // pred_fallthru
      _
    // Predicated region
    $region26: #{tpu_custom_call.1} parent=1 // pred_check
      _
    $region27: #{tpu_custom_call.1} parent=1 // pred_check_branch
      %37 = sbr.rel (0) target = $region29
    $region28: #{tpu_custom_call.1} parent=1 // pred_region
      _
    $region29: #{tpu_custom_call.1} parent=1 // pred_fallthru
      _
    // Predicated region
    $region30: #{tpu_custom_call.1} parent=1 // pred_check
      _
    $region31: #{tpu_custom_call.1} parent=1 // pred_check_branch
      %39 = sbr.rel (0) target = $region33
    $region32: #{tpu_custom_call.1} parent=1 // pred_region
      %40 = dma.done [#allocation3], 256
    $region33: #{tpu_custom_call.1} parent=1 // pred_fallthru
      _
    %v42 = vld [vmem:[%s0] sm:$0xff]
    %v43 = vld [vmem:[%s0 + $0x8] sm:$0xff]
    %v44 = vpack.c.bf16 %v43, %v42
    %v45 = vld [vmem:[%s1] sm:$0xf]
    %v46 = vld [vmem:[%s1 + $0x4] sm:$0xf]
    %v47 = vld [vmem:[%s1 + $0x8] sm:$0xf]
    %v48 = vld [vmem:[%s1 + $0xc] sm:$0xf]
    %v53 = vunpack.c.l.b16 %v45
    %v54 = vunpack.c.l.b16 %v46
    %v55 = vunpack.c.l.b16 %v47
    %v56 = vunpack.c.l.b16 %v48
    %v57 = vpack.c.b16 %v54, %v53
    %v58 = vpack.c.b16 %v56, %v55
    %vm61 = vcmask 261120
    %v63 = vsel %vm61, %v44, 0
    %65 = vmatprep.subr.bf16.mxu0 0
    %66 = vmatpush1.bf16.msra.mxu0 %v57
    %67 = vmatprep.subr.bf16.mxu0 0
    %68 = vmatpush1.bf16.msra.mxu0 %v58
    %69 = vmatprep.subr.bf16.mxu0 0
    %70 = vmatpush1.bf16.msra.mxu0 0
    %71 = vmatprep.subr.bf16.mxu0 0
    %72 = vmatpush1.bf16.msra.mxu0 0
    %73 = vmatprep.subr.bf16.mxu0 0
    %74 = vmatpush1.bf16.msra.mxu0 0
    %75 = vmatprep.subr.bf16.mxu0 0
    %76 = vmatpush1.bf16.msra.mxu0 0
    %77 = vmatprep.subr.bf16.mxu0 0
    %78 = vmatpush1.bf16.msra.mxu0 0
    %79 = vmatprep.subr.bf16.mxu0 0
    %80 = vmatpush1.bf16.msra.mxu0 0
    %81 = vmatprep.subr.bf16.mxu0 0
    %82 = vmatpush1.bf16.msra.mxu0 0
    %83 = vmatprep.subr.bf16.mxu0 0
    %84 = vmatpush1.bf16.msra.mxu0 0
    %85 = vmatprep.subr.bf16.mxu0 0
    %86 = vmatpush1.bf16.msra.mxu0 0
    %87 = vmatprep.subr.bf16.mxu0 0
    %88 = vmatpush1.bf16.msra.mxu0 0
    %89 = vmatprep.subr.bf16.mxu0 0
    %90 = vmatpush1.bf16.msra.mxu0 0
    %91 = vmatprep.subr.bf16.mxu0 0
    %92 = vmatpush1.bf16.msra.mxu0 0
    %93 = vmatprep.subr.bf16.mxu0 0
    %94 = vmatpush1.bf16.msra.mxu0 0
    %95 = vmatprep.subr.bf16.mxu0 0
    %96 = vmatpush1.bf16.msra.mxu0 0
    %97 = vmatprep.mubr.bf16.mxu0 0
    %98 = vmatmul.mubr.bf16.gmra.mrb[0].mxu0 %v63
    %v99 = vpop.f32.mrb[0].mxu0
    %v100 = vadd.f32 0.0, %v99
    %v101 = vpop.f32.mrb[0].mxu0
    %v102 = vpop.f32.mrb[0].mxu0
    %v103 = vadd.f32 0.0, %v102
    %v104 = vpop.f32.mrb[0].mxu0
    %105 = vdwg.mxu0
    %v106 = vlaneseq
    %v107 = vshrl.u32 %v106, 7
    %v108 = vlaneseq
    %v109 = vand.u32 %v108, 127
    %vm110 = vcmp.le.s32.totalorder %v109, %v107
    %v111 = vpack.c.bf16 %v100, %v100
    %113 = vrot.lane.b32.xlu0 %v111, 96
    %v114 = vpop.permute.xlu0 %113
    %vm115 = vcmask 64512
    %v117 = vsel %vm115, %v111, 0
    %v120 = vsel %vm115, %v114, 0
    %122 = vmatprep.subr.bf16.mxu0 0
    %123 = vmatpush1.bf16.xpose.msra.mxu0 %v120
    %124 = vmatprep.subr.bf16.mxu0 0
    %125 = vmatpush1.bf16.xpose.msra.mxu0 0
    %126 = vmatprep.subr.bf16.mxu0 0
    %127 = vmatpush1.bf16.xpose.msra.mxu0 0
    %128 = vmatprep.subr.bf16.mxu0 0
    %129 = vmatpush1.bf16.xpose.msra.mxu0 0
    %130 = vmatprep.subr.bf16.mxu0 0
    %131 = vmatpush1.bf16.xpose.msra.mxu0 0
    %132 = vmatprep.subr.bf16.mxu0 0
    %133 = vmatpush1.bf16.xpose.msra.mxu0 0
    %134 = vmatprep.subr.bf16.mxu0 0
    %135 = vmatpush1.bf16.xpose.msra.mxu0 0
    %136 = vmatprep.subr.bf16.mxu0 0
    %137 = vmatpush1.bf16.xpose.msra.mxu0 0
    %138 = vmatprep.subr.bf16.mxu0 0
    %139 = vmatpush1.bf16.xpose.msra.mxu0 0
    %140 = vmatprep.subr.bf16.mxu0 0
    %141 = vmatpush1.bf16.xpose.msra.mxu0 0
    %142 = vmatprep.subr.bf16.mxu0 0
    %143 = vmatpush1.bf16.xpose.msra.mxu0 0
    %144 = vmatprep.subr.bf16.mxu0 0
    %145 = vmatpush1.bf16.xpose.msra.mxu0 0
    %146 = vmatprep.subr.bf16.mxu0 0
    %147 = vmatpush1.bf16.xpose.msra.mxu0 0
    %148 = vmatprep.subr.bf16.mxu0 0
    %149 = vmatpush1.bf16.xpose.msra.mxu0 0
    %150 = vmatprep.subr.bf16.mxu0 0
    %151 = vmatpush1.bf16.xpose.msra.mxu0 0
    %152 = vmatprep.subr.bf16.mxu0 0
    %153 = vmatpush1.bf16.xpose.msra.mxu0 0
    %154 = vmatprep.mubr.bf16.mxu0 0
    %155 = vmatmul.mubr.bf16.gmra.mrb[0].mxu0 %v117
    %v156 = vpop.f32.mrb[0].mxu0
    %v157 = vadd.f32 0.0, %v156
    %v158 = vpop.f32.mrb[0].mxu0
    %v159 = vpop.f32.mrb[0].mxu0
    %v160 = vpop.f32.mrb[0].mxu0
    %161 = vdwg.mxu0
    %v162 = vsel %vm110, %v157, -1e+10
    %v163 = vsel %vm115, %v162, -inf
    %164 = vmax.xlane.f32.xlu0 %v163
    %v165 = vpop.xlane.xlu0 %164
    %v166 = vsub.f32 %v162, %v165
    %v167 = vmul.f32 %v166, 1.442695
    %v168 = vpow.pop %v167
    %v169 = vsel %vm115, %v168, 0.0
    %170 = vadd.xlane.f32.xlu0 %v169
    %v171 = vpop.xlane.xlu0 %170
    %v172 = vrcp.pop %v171
    %v173 = vmul.f32 %v168, %v172
    %v174 = vpack.c.bf16 %v173, %v173
    %175 = vrot.lane.b32.xlu0 %v111, 64
    %v176 = vpop.permute.xlu0 %175
    %v178 = vsel %vm115, %v174, 0
    %vm180 = vcmask 1043456
    %v182 = vsel %vm180, %v176, 0
    %184 = vmatprep.subr.bf16.mxu0 0
    %185 = vmatpush1.bf16.msra.mxu0 %v182
    %186 = vmatprep.subr.bf16.mxu0 0
    %187 = vmatpush1.bf16.msra.mxu0 0
    %188 = vmatprep.subr.bf16.mxu0 0
    %189 = vmatpush1.bf16.msra.mxu0 0
    %190 = vmatprep.subr.bf16.mxu0 0
    %191 = vmatpush1.bf16.msra.mxu0 0
    %192 = vmatprep.subr.bf16.mxu0 0
    %193 = vmatpush1.bf16.msra.mxu0 0
    %194 = vmatprep.subr.bf16.mxu0 0
    %195 = vmatpush1.bf16.msra.mxu0 0
    %196 = vmatprep.subr.bf16.mxu0 0
    %197 = vmatpush1.bf16.msra.mxu0 0
    %198 = vmatprep.subr.bf16.mxu0 0
    %199 = vmatpush1.bf16.msra.mxu0 0
    %200 = vmatprep.subr.bf16.mxu0 0
    %201 = vmatpush1.bf16.msra.mxu0 0
    %202 = vmatprep.subr.bf16.mxu0 0
    %203 = vmatpush1.bf16.msra.mxu0 0
    %204 = vmatprep.subr.bf16.mxu0 0
    %205 = vmatpush1.bf16.msra.mxu0 0
    %206 = vmatprep.subr.bf16.mxu0 0
    %207 = vmatpush1.bf16.msra.mxu0 0
    %208 = vmatprep.subr.bf16.mxu0 0
    %209 = vmatpush1.bf16.msra.mxu0 0
    %210 = vmatprep.subr.bf16.mxu0 0
    %211 = vmatpush1.bf16.msra.mxu0 0
    %212 = vmatprep.subr.bf16.mxu0 0
    %213 = vmatpush1.bf16.msra.mxu0 0
    %214 = vmatprep.subr.bf16.mxu0 0
    %215 = vmatpush1.bf16.msra.mxu0 0
    %216 = vmatprep.mubr.bf16.mxu0 0
    %217 = vmatmul.mubr.bf16.gmra.mrb[0].mxu0 %v178
    %v218 = vpop.f32.mrb[0].mxu0
    %v219 = vadd.f32 0.0, %v218
    %v220 = vpop.f32.mrb[0].mxu0
    %v221 = vpop.f32.mrb[0].mxu0
    %v222 = vpop.f32.mrb[0].mxu0
    %223 = vdwg.mxu0
    %224 = vrot.lane.b32.xlu0 %v111, 120
    %v225 = vpop.permute.xlu0 %224
    %226 = vrot.lane.b32.xlu0 %v111, 88
    %v227 = vpop.permute.xlu0 %226
    %v229 = vsel %vm115, %v225, 0
    %v232 = vsel %vm115, %v227, 0
    %234 = vmatprep.subr.bf16.mxu0 0
    %235 = vmatpush1.bf16.xpose.msra.mxu0 %v232
    %236 = vmatprep.subr.bf16.mxu0 0
    %237 = vmatpush1.bf16.xpose.msra.mxu0 0
    %238 = vmatprep.subr.bf16.mxu0 0
    %239 = vmatpush1.bf16.xpose.msra.mxu0 0
    %240 = vmatprep.subr.bf16.mxu0 0
    %241 = vmatpush1.bf16.xpose.msra.mxu0 0
    %242 = vmatprep.subr.bf16.mxu0 0
    %243 = vmatpush1.bf16.xpose.msra.mxu0 0
    %244 = vmatprep.subr.bf16.mxu0 0
    %245 = vmatpush1.bf16.xpose.msra.mxu0 0
    %246 = vmatprep.subr.bf16.mxu0 0
    %247 = vmatpush1.bf16.xpose.msra.mxu0 0
    %248 = vmatprep.subr.bf16.mxu0 0
    %249 = vmatpush1.bf16.xpose.msra.mxu0 0
    %250 = vmatprep.subr.bf16.mxu0 0
    %251 = vmatpush1.bf16.xpose.msra.mxu0 0
    %252 = vmatprep.subr.bf16.mxu0 0
    %253 = vmatpush1.bf16.xpose.msra.mxu0 0
    %254 = vmatprep.subr.bf16.mxu0 0
    %255 = vmatpush1.bf16.xpose.msra.mxu0 0
    %256 = vmatprep.subr.bf16.mxu0 0
    %257 = vmatpush1.bf16.xpose.msra.mxu0 0
    %258 = vmatprep.subr.bf16.mxu0 0
    %259 = vmatpush1.bf16.xpose.msra.mxu0 0
    %260 = vmatprep.subr.bf16.mxu0 0
    %261 = vmatpush1.bf16.xpose.msra.mxu0 0
    %262 = vmatprep.subr.bf16.mxu0 0
    %263 = vmatpush1.bf16.xpose.msra.mxu0 0
    %264 = vmatprep.subr.bf16.mxu0 0
    %265 = vmatpush1.bf16.xpose.msra.mxu0 0
    %266 = vmatprep.mubr.bf16.mxu0 0
    %267 = vmatmul.mubr.bf16.gmra.mrb[0].mxu0 %v229
    %v268 = vpop.f32.mrb[0].mxu0
    %v269 = vadd.f32 0.0, %v268
    %v270 = vpop.f32.mrb[0].mxu0
    %v271 = vpop.f32.mrb[0].mxu0
    %v272 = vpop.f32.mrb[0].mxu0
    %273 = vdwg.mxu0
    %v274 = vsel %vm110, %v269, -1e+10
    %v275 = vsel %vm115, %v274, -inf
    %276 = vmax.xlane.f32.xlu0 %v275
    %v277 = vpop.xlane.xlu0 %276
    %v278 = vsub.f32 %v274, %v277
    %v279 = vmul.f32 %v278, 1.442695
    %v280 = vpow.pop %v279
    %v281 = vsel %vm115, %v280, 0.0
    %282 = vadd.xlane.f32.xlu0 %v281
    %v283 = vpop.xlane.xlu0 %282
    %v284 = vrcp.pop %v283
    %v285 = vmul.f32 %v280, %v284
    %v286 = vpack.c.bf16 %v285, %v285
    %287 = vrot.lane.b32.xlu0 %v111, 56
    %v288 = vpop.permute.xlu0 %287
    %v290 = vsel %vm115, %v286, 0
    %v293 = vsel %vm180, %v288, 0
    %295 = vmatprep.subr.bf16.mxu0 0
    %296 = vmatpush1.bf16.msra.mxu0 %v293
    %297 = vmatprep.subr.bf16.mxu0 0
    %298 = vmatpush1.bf16.msra.mxu0 0
    %299 = vmatprep.subr.bf16.mxu0 0
    %300 = vmatpush1.bf16.msra.mxu0 0
    %301 = vmatprep.subr.bf16.mxu0 0
    %302 = vmatpush1.bf16.msra.mxu0 0
    %303 = vmatprep.subr.bf16.mxu0 0
    %304 = vmatpush1.bf16.msra.mxu0 0
    %305 = vmatprep.subr.bf16.mxu0 0
    %306 = vmatpush1.bf16.msra.mxu0 0
    %307 = vmatprep.subr.bf16.mxu0 0
    %308 = vmatpush1.bf16.msra.mxu0 0
    %309 = vmatprep.subr.bf16.mxu0 0
    %310 = vmatpush1.bf16.msra.mxu0 0
    %311 = vmatprep.subr.bf16.mxu0 0
    %312 = vmatpush1.bf16.msra.mxu0 0
    %313 = vmatprep.subr.bf16.mxu0 0
    %314 = vmatpush1.bf16.msra.mxu0 0
    %315 = vmatprep.subr.bf16.mxu0 0
    %316 = vmatpush1.bf16.msra.mxu0 0
    %317 = vmatprep.subr.bf16.mxu0 0
    %318 = vmatpush1.bf16.msra.mxu0 0
    %319 = vmatprep.subr.bf16.mxu0 0
    %320 = vmatpush1.bf16.msra.mxu0 0
    %321 = vmatprep.subr.bf16.mxu0 0
    %322 = vmatpush1.bf16.msra.mxu0 0
    %323 = vmatprep.subr.bf16.mxu0 0
    %324 = vmatpush1.bf16.msra.mxu0 0
    %325 = vmatprep.subr.bf16.mxu0 0
    %326 = vmatpush1.bf16.msra.mxu0 0
    %327 = vmatprep.mubr.bf16.mxu0 0
    %328 = vmatmul.mubr.bf16.gmra.mrb[0].mxu0 %v290
    %v329 = vpop.f32.mrb[0].mxu0
    %v330 = vadd.f32 0.0, %v329
    %v331 = vpop.f32.mrb[0].mxu0
    %v332 = vpop.f32.mrb[0].mxu0
    %v333 = vpop.f32.mrb[0].mxu0
    %334 = vdwg.mxu0
    %335 = vrot.lane.b32.xlu0 %v111, 112
    %v336 = vpop.permute.xlu0 %335
    %337 = vrot.lane.b32.xlu0 %v111, 80
    %v338 = vpop.permute.xlu0 %337
    %v340 = vsel %vm115, %v336, 0
    %v343 = vsel %vm115, %v338, 0
    %345 = vmatprep.subr.bf16.mxu0 0
    %346 = vmatpush1.bf16.xpose.msra.mxu0 %v343
    %347 = vmatprep.subr.bf16.mxu0 0
    %348 = vmatpush1.bf16.xpose.msra.mxu0 0
    %349 = vmatprep.subr.bf16.mxu0 0
    %350 = vmatpush1.bf16.xpose.msra.mxu0 0
    %351 = vmatprep.subr.bf16.mxu0 0
    %352 = vmatpush1.bf16.xpose.msra.mxu0 0
    %353 = vmatprep.subr.bf16.mxu0 0
    %354 = vmatpush1.bf16.xpose.msra.mxu0 0
    %355 = vmatprep.subr.bf16.mxu0 0
    %356 = vmatpush1.bf16.xpose.msra.mxu0 0
    %357 = vmatprep.subr.bf16.mxu0 0
    %358 = vmatpush1.bf16.xpose.msra.mxu0 0
    %359 = vmatprep.subr.bf16.mxu0 0
    %360 = vmatpush1.bf16.xpose.msra.mxu0 0
    %361 = vmatprep.subr.bf16.mxu0 0
    %362 = vmatpush1.bf16.xpose.msra.mxu0 0
    %363 = vmatprep.subr.bf16.mxu0 0
    %364 = vmatpush1.bf16.xpose.msra.mxu0 0
    %365 = vmatprep.subr.bf16.mxu0 0
    %366 = vmatpush1.bf16.xpose.msra.mxu0 0
    %367 = vmatprep.subr.bf16.mxu0 0
    %368 = vmatpush1.bf16.xpose.msra.mxu0 0
    %369 = vmatprep.subr.bf16.mxu0 0
    %370 = vmatpush1.bf16.xpose.msra.mxu0 0
    %371 = vmatprep.subr.bf16.mxu0 0
    %372 = vmatpush1.bf16.xpose.msra.mxu0 0
    %373 = vmatprep.subr.bf16.mxu0 0
    %374 = vmatpush1.bf16.xpose.msra.mxu0 0
    %375 = vmatprep.subr.bf16.mxu0 0
    %376 = vmatpush1.bf16.xpose.msra.mxu0 0
    %377 = vmatprep.mubr.bf16.mxu0 0
    %378 = vmatmul.mubr.bf16.gmra.mrb[0].mxu0 %v340
    %v379 = vpop.f32.mrb[0].mxu0
    %v380 = vadd.f32 0.0, %v379
    %v381 = vpop.f32.mrb[0].mxu0
    %v382 = vpop.f32.mrb[0].mxu0
    %v383 = vpop.f32.mrb[0].mxu0
    %384 = vdwg.mxu0
    %v385 = vsel %vm110, %v380, -1e+10
    %v386 = vsel %vm115, %v385, -inf
    %387 = vmax.xlane.f32.xlu0 %v386
    %v388 = vpop.xlane.xlu0 %387
    %v389 = vsub.f32 %v385, %v388
    %v390 = vmul.f32 %v389, 1.442695
    %v391 = vpow.pop %v390
    %v392 = vsel %vm115, %v391, 0.0
    %393 = vadd.xlane.f32.xlu0 %v392
    %v394 = vpop.xlane.xlu0 %393
    %v395 = vrcp.pop %v394
    %v396 = vmul.f32 %v391, %v395
    %v397 = vpack.c.bf16 %v396, %v396
    %398 = vrot.lane.b32.xlu0 %v111, 48
    %v399 = vpop.permute.xlu0 %398
    %v401 = vsel %vm115, %v397, 0
    %v404 = vsel %vm180, %v399, 0
    %406 = vmatprep.subr.bf16.mxu0 0
    %407 = vmatpush1.bf16.msra.mxu0 %v404
    %408 = vmatprep.subr.bf16.mxu0 0
    %409 = vmatpush1.bf16.msra.mxu0 0
    %410 = vmatprep.subr.bf16.mxu0 0
    %411 = vmatpush1.bf16.msra.mxu0 0
    %412 = vmatprep.subr.bf16.mxu0 0
    %413 = vmatpush1.bf16.msra.mxu0 0
    %414 = vmatprep.subr.bf16.mxu0 0
    %415 = vmatpush1.bf16.msra.mxu0 0
    %416 = vmatprep.subr.bf16.mxu0 0
    %417 = vmatpush1.bf16.msra.mxu0 0
    %418 = vmatprep.subr.bf16.mxu0 0
    %419 = vmatpush1.bf16.msra.mxu0 0
    %420 = vmatprep.subr.bf16.mxu0 0
    %421 = vmatpush1.bf16.msra.mxu0 0
    %422 = vmatprep.subr.bf16.mxu0 0
    %423 = vmatpush1.bf16.msra.mxu0 0
    %424 = vmatprep.subr.bf16.mxu0 0
    %425 = vmatpush1.bf16.msra.mxu0 0
    %426 = vmatprep.subr.bf16.mxu0 0
    %427 = vmatpush1.bf16.msra.mxu0 0
    %428 = vmatprep.subr.bf16.mxu0 0
    %429 = vmatpush1.bf16.msra.mxu0 0
    %430 = vmatprep.subr.bf16.mxu0 0
    %431 = vmatpush1.bf16.msra.mxu0 0
    %432 = vmatprep.subr.bf16.mxu0 0
    %433 = vmatpush1.bf16.msra.mxu0 0
    %434 = vmatprep.subr.bf16.mxu0 0
    %435 = vmatpush1.bf16.msra.mxu0 0
    %436 = vmatprep.subr.bf16.mxu0 0
    %437 = vmatpush1.bf16.msra.mxu0 0
    %438 = vmatprep.mubr.bf16.mxu0 0
    %439 = vmatmul.mubr.bf16.gmra.mrb[0].mxu0 %v401
    %v440 = vpop.f32.mrb[0].mxu0
    %v441 = vadd.f32 0.0, %v440
    %v442 = vpop.f32.mrb[0].mxu0
    %v443 = vpop.f32.mrb[0].mxu0
    %v444 = vpop.f32.mrb[0].mxu0
    %445 = vdwg.mxu0
    %446 = vrot.lane.b32.xlu0 %v111, 104
    %v447 = vpop.permute.xlu0 %446
    %448 = vrot.lane.b32.xlu0 %v111, 72
    %v449 = vpop.permute.xlu0 %448
    %v451 = vsel %vm115, %v447, 0
    %v454 = vsel %vm115, %v449, 0
    %456 = vmatprep.subr.bf16.mxu0 0
    %457 = vmatpush1.bf16.xpose.msra.mxu0 %v454
    %458 = vmatprep.subr.bf16.mxu0 0
    %459 = vmatpush1.bf16.xpose.msra.mxu0 0
    %460 = vmatprep.subr.bf16.mxu0 0
    %461 = vmatpush1.bf16.xpose.msra.mxu0 0
    %462 = vmatprep.subr.bf16.mxu0 0
    %463 = vmatpush1.bf16.xpose.msra.mxu0 0
    %464 = vmatprep.subr.bf16.mxu0 0
    %465 = vmatpush1.bf16.xpose.msra.mxu0 0
    %466 = vmatprep.subr.bf16.mxu0 0
    %467 = vmatpush1.bf16.xpose.msra.mxu0 0
    %468 = vmatprep.subr.bf16.mxu0 0
    %469 = vmatpush1.bf16.xpose.msra.mxu0 0
    %470 = vmatprep.subr.bf16.mxu0 0
    %471 = vmatpush1.bf16.xpose.msra.mxu0 0
    %472 = vmatprep.subr.bf16.mxu0 0
    %473 = vmatpush1.bf16.xpose.msra.mxu0 0
    %474 = vmatprep.subr.bf16.mxu0 0
    %475 = vmatpush1.bf16.xpose.msra.mxu0 0
    %476 = vmatprep.subr.bf16.mxu0 0
    %477 = vmatpush1.bf16.xpose.msra.mxu0 0
    %478 = vmatprep.subr.bf16.mxu0 0
    %479 = vmatpush1.bf16.xpose.msra.mxu0 0
    %480 = vmatprep.subr.bf16.mxu0 0
    %481 = vmatpush1.bf16.xpose.msra.mxu0 0
    %482 = vmatprep.subr.bf16.mxu0 0
    %483 = vmatpush1.bf16.xpose.msra.mxu0 0
    %484 = vmatprep.subr.bf16.mxu0 0
    %485 = vmatpush1.bf16.xpose.msra.mxu0 0
    %486 = vmatprep.subr.bf16.mxu0 0
    %487 = vmatpush1.bf16.xpose.msra.mxu0 0
    %488 = vmatprep.mubr.bf16.mxu0 0
    %489 = vmatmul.mubr.bf16.gmra.mrb[0].mxu0 %v451
    %v490 = vpop.f32.mrb[0].mxu0
    %v491 = vadd.f32 0.0, %v490
    %v492 = vpop.f32.mrb[0].mxu0
    %v493 = vpop.f32.mrb[0].mxu0
    %v494 = vpop.f32.mrb[0].mxu0
    %495 = vdwg.mxu0
    %v496 = vsel %vm110, %v491, -1e+10
    %v497 = vsel %vm115, %v496, -inf
    %498 = vmax.xlane.f32.xlu0 %v497
    %v499 = vpop.xlane.xlu0 %498
    %v500 = vsub.f32 %v496, %v499
    %v501 = vmul.f32 %v500, 1.442695
    %v502 = vpow.pop %v501
    %v503 = vsel %vm115, %v502, 0.0
    %504 = vadd.xlane.f32.xlu0 %v503
    %v505 = vpop.xlane.xlu0 %504
    %v506 = vrcp.pop %v505
    %v507 = vmul.f32 %v502, %v506
    %v508 = vpack.c.bf16 %v507, %v507
    %509 = vrot.lane.b32.xlu0 %v111, 40
    %v510 = vpop.permute.xlu0 %509
    %v512 = vsel %vm115, %v508, 0
    %v515 = vsel %vm180, %v510, 0
    %517 = vmatprep.subr.bf16.mxu0 0
    %518 = vmatpush1.bf16.msra.mxu0 %v515
    %519 = vmatprep.subr.bf16.mxu0 0
    %520 = vmatpush1.bf16.msra.mxu0 0
    %521 = vmatprep.subr.bf16.mxu0 0
    %522 = vmatpush1.bf16.msra.mxu0 0
    %523 = vmatprep.subr.bf16.mxu0 0
    %524 = vmatpush1.bf16.msra.mxu0 0
    %525 = vmatprep.subr.bf16.mxu0 0
    %526 = vmatpush1.bf16.msra.mxu0 0
    %527 = vmatprep.subr.bf16.mxu0 0
    %528 = vmatpush1.bf16.msra.mxu0 0
    %529 = vmatprep.subr.bf16.mxu0 0
    %530 = vmatpush1.bf16.msra.mxu0 0
    %531 = vmatprep.subr.bf16.mxu0 0
    %532 = vmatpush1.bf16.msra.mxu0 0
    %533 = vmatprep.subr.bf16.mxu0 0
    %534 = vmatpush1.bf16.msra.mxu0 0
    %535 = vmatprep.subr.bf16.mxu0 0
    %536 = vmatpush1.bf16.msra.mxu0 0
    %537 = vmatprep.subr.bf16.mxu0 0
    %538 = vmatpush1.bf16.msra.mxu0 0
    %539 = vmatprep.subr.bf16.mxu0 0
    %540 = vmatpush1.bf16.msra.mxu0 0
    %541 = vmatprep.subr.bf16.mxu0 0
    %542 = vmatpush1.bf16.msra.mxu0 0
    %543 = vmatprep.subr.bf16.mxu0 0
    %544 = vmatpush1.bf16.msra.mxu0 0
    %545 = vmatprep.subr.bf16.mxu0 0
    %546 = vmatpush1.bf16.msra.mxu0 0
    %547 = vmatprep.subr.bf16.mxu0 0
    %548 = vmatpush1.bf16.msra.mxu0 0
    %549 = vmatprep.mubr.bf16.mxu0 0
    %550 = vmatmul.mubr.bf16.gmra.mrb[0].mxu0 %v512
    %v551 = vpop.f32.mrb[0].mxu0
    %v552 = vadd.f32 0.0, %v551
    %v553 = vpop.f32.mrb[0].mxu0
    %v554 = vpop.f32.mrb[0].mxu0
    %v555 = vpop.f32.mrb[0].mxu0
    %556 = vdwg.mxu0
    %558 = vrot.lane.b32.xlu0 %v330, 8
    %v559 = vpop.permute.xlu0 %558
    %562 = vrot.lane.b32.xlu0 %v441, 16
    %v563 = vpop.permute.xlu0 %562
    %566 = vrot.lane.b32.xlu0 %v552, 24
    %v567 = vpop.permute.xlu0 %566
    %v569 = vsel %vm115, %v219, %v559
    %vm570 = vcmask 130048
    %v571 = vsel %vm570, %v569, %v563
    %vm572 = vcmask 195584
    %v573 = vsel %vm572, %v571, %v567
    %v574 = vpack.c.bf16 %v103, %v103
    %576 = vrot.lane.b32.xlu0 %v574, 96
    %v577 = vpop.permute.xlu0 %576
    %v579 = vsel %vm115, %v574, 0
    %v582 = vsel %vm115, %v577, 0
    %584 = vmatprep.subr.bf16.mxu0 0
    %585 = vmatpush1.bf16.xpose.msra.mxu0 %v582
    %586 = vmatprep.subr.bf16.mxu0 0
    %587 = vmatpush1.bf16.xpose.msra.mxu0 0
    %588 = vmatprep.subr.bf16.mxu0 0
    %589 = vmatpush1.bf16.xpose.msra.mxu0 0
    %590 = vmatprep.subr.bf16.mxu0 0
    %591 = vmatpush1.bf16.xpose.msra.mxu0 0
    %592 = vmatprep.subr.bf16.mxu0 0
    %593 = vmatpush1.bf16.xpose.msra.mxu0 0
    %594 = vmatprep.subr.bf16.mxu0 0
    %595 = vmatpush1.bf16.xpose.msra.mxu0 0
    %596 = vmatprep.subr.bf16.mxu0 0
    %597 = vmatpush1.bf16.xpose.msra.mxu0 0
    %598 = vmatprep.subr.bf16.mxu0 0
    %599 = vmatpush1.bf16.xpose.msra.mxu0 0
    %600 = vmatprep.subr.bf16.mxu0 0
    %601 = vmatpush1.bf16.xpose.msra.mxu0 0
    %602 = vmatprep.subr.bf16.mxu0 0
    %603 = vmatpush1.bf16.xpose.msra.mxu0 0
    %604 = vmatprep.subr.bf16.mxu0 0
    %605 = vmatpush1.bf16.xpose.msra.mxu0 0
    %606 = vmatprep.subr.bf16.mxu0 0
    %607 = vmatpush1.bf16.xpose.msra.mxu0 0
    %608 = vmatprep.subr.bf16.mxu0 0
    %609 = vmatpush1.bf16.xpose.msra.mxu0 0
    %610 = vmatprep.subr.bf16.mxu0 0
    %611 = vmatpush1.bf16.xpose.msra.mxu0 0
    %612 = vmatprep.subr.bf16.mxu0 0
    %613 = vmatpush1.bf16.xpose.msra.mxu0 0
    %614 = vmatprep.subr.bf16.mxu0 0
    %615 = vmatpush1.bf16.xpose.msra.mxu0 0
    %616 = vmatprep.mubr.bf16.mxu0 0
    %617 = vmatmul.mubr.bf16.gmra.mrb[0].mxu0 %v579
    %v618 = vpop.f32.mrb[0].mxu0
    %v619 = vadd.f32 0.0, %v618
    %v620 = vpop.f32.mrb[0].mxu0
    %v621 = vpop.f32.mrb[0].mxu0
    %v622 = vpop.f32.mrb[0].mxu0
    %623 = vdwg.mxu0
    %v624 = vsel %vm110, %v619, -1e+10
    %v625 = vsel %vm115, %v624, -inf
    %626 = vmax.xlane.f32.xlu0 %v625
    %v627 = vpop.xlane.xlu0 %626
    %v628 = vsub.f32 %v624, %v627
    %v629 = vmul.f32 %v628, 1.442695
    %v630 = vpow.pop %v629
    %v631 = vsel %vm115, %v630, 0.0
    %632 = vadd.xlane.f32.xlu0 %v631
    %v633 = vpop.xlane.xlu0 %632
    %v634 = vrcp.pop %v633
    %v635 = vmul.f32 %v630, %v634
    %v636 = vpack.c.bf16 %v635, %v635
    %637 = vrot.lane.b32.xlu0 %v574, 64
    %v638 = vpop.permute.xlu0 %637
    %v640 = vsel %vm115, %v636, 0
    %v643 = vsel %vm180, %v638, 0
    %645 = vmatprep.subr.bf16.mxu0 0
    %646 = vmatpush1.bf16.msra.mxu0 %v643
    %647 = vmatprep.subr.bf16.mxu0 0
    %648 = vmatpush1.bf16.msra.mxu0 0
    %649 = vmatprep.subr.bf16.mxu0 0
    %650 = vmatpush1.bf16.msra.mxu0 0
    %651 = vmatprep.subr.bf16.mxu0 0
    %652 = vmatpush1.bf16.msra.mxu0 0
    %653 = vmatprep.subr.bf16.mxu0 0
    %654 = vmatpush1.bf16.msra.mxu0 0
    %655 = vmatprep.subr.bf16.mxu0 0
    %656 = vmatpush1.bf16.msra.mxu0 0
    %657 = vmatprep.subr.bf16.mxu0 0
    %658 = vmatpush1.bf16.msra.mxu0 0
    %659 = vmatprep.subr.bf16.mxu0 0
    %660 = vmatpush1.bf16.msra.mxu0 0
    %661 = vmatprep.subr.bf16.mxu0 0
    %662 = vmatpush1.bf16.msra.mxu0 0
    %663 = vmatprep.subr.bf16.mxu0 0
    %664 = vmatpush1.bf16.msra.mxu0 0
    %665 = vmatprep.subr.bf16.mxu0 0
    %666 = vmatpush1.bf16.msra.mxu0 0
    %667 = vmatprep.subr.bf16.mxu0 0
    %668 = vmatpush1.bf16.msra.mxu0 0
    %669 = vmatprep.subr.bf16.mxu0 0
    %670 = vmatpush1.bf16.msra.mxu0 0
    %671 = vmatprep.subr.bf16.mxu0 0
    %672 = vmatpush1.bf16.msra.mxu0 0
    %673 = vmatprep.subr.bf16.mxu0 0
    %674 = vmatpush1.bf16.msra.mxu0 0
    %675 = vmatprep.subr.bf16.mxu0 0
    %676 = vmatpush1.bf16.msra.mxu0 0
    %677 = vmatprep.mubr.bf16.mxu0 0
    %678 = vmatmul.mubr.bf16.gmra.mrb[0].mxu0 %v640
    %v679 = vpop.f32.mrb[0].mxu0
    %v680 = vadd.f32 0.0, %v679
    %v681 = vpop.f32.mrb[0].mxu0
    %v682 = vpop.f32.mrb[0].mxu0
    %v683 = vpop.f32.mrb[0].mxu0
    %684 = vdwg.mxu0
    %685 = vrot.lane.b32.xlu0 %v574, 120
    %v686 = vpop.permute.xlu0 %685
    %687 = vrot.lane.b32.xlu0 %v574, 88
    %v688 = vpop.permute.xlu0 %687
    %v690 = vsel %vm115, %v686, 0
    %v693 = vsel %vm115, %v688, 0
    %695 = vmatprep.subr.bf16.mxu0 0
    %696 = vmatpush1.bf16.xpose.msra.mxu0 %v693
    %697 = vmatprep.subr.bf16.mxu0 0
    %698 = vmatpush1.bf16.xpose.msra.mxu0 0
    %699 = vmatprep.subr.bf16.mxu0 0
    %700 = vmatpush1.bf16.xpose.msra.mxu0 0
    %701 = vmatprep.subr.bf16.mxu0 0
    %702 = vmatpush1.bf16.xpose.msra.mxu0 0
    %703 = vmatprep.subr.bf16.mxu0 0
    %704 = vmatpush1.bf16.xpose.msra.mxu0 0
    %705 = vmatprep.subr.bf16.mxu0 0
    %706 = vmatpush1.bf16.xpose.msra.mxu0 0
    %707 = vmatprep.subr.bf16.mxu0 0
    %708 = vmatpush1.bf16.xpose.msra.mxu0 0
    %709 = vmatprep.subr.bf16.mxu0 0
    %710 = vmatpush1.bf16.xpose.msra.mxu0 0
    %711 = vmatprep.subr.bf16.mxu0 0
    %712 = vmatpush1.bf16.xpose.msra.mxu0 0
    %713 = vmatprep.subr.bf16.mxu0 0
    %714 = vmatpush1.bf16.xpose.msra.mxu0 0
    %715 = vmatprep.subr.bf16.mxu0 0
    %716 = vmatpush1.bf16.xpose.msra.mxu0 0
    %717 = vmatprep.subr.bf16.mxu0 0
    %718 = vmatpush1.bf16.xpose.msra.mxu0 0
    %719 = vmatprep.subr.bf16.mxu0 0
    %720 = vmatpush1.bf16.xpose.msra.mxu0 0
    %721 = vmatprep.subr.bf16.mxu0 0
    %722 = vmatpush1.bf16.xpose.msra.mxu0 0
    %723 = vmatprep.subr.bf16.mxu0 0
    %724 = vmatpush1.bf16.xpose.msra.mxu0 0
    %725 = vmatprep.subr.bf16.mxu0 0
    %726 = vmatpush1.bf16.xpose.msra.mxu0 0
    %727 = vmatprep.mubr.bf16.mxu0 0
    %728 = vmatmul.mubr.bf16.gmra.mrb[0].mxu0 %v690
    %v729 = vpop.f32.mrb[0].mxu0
    %v730 = vadd.f32 0.0, %v729
    %v731 = vpop.f32.mrb[0].mxu0
    %v732 = vpop.f32.mrb[0].mxu0
    %v733 = vpop.f32.mrb[0].mxu0
    %734 = vdwg.mxu0
    %v735 = vsel %vm110, %v730, -1e+10
    %v736 = vsel %vm115, %v735, -inf
    %737 = vmax.xlane.f32.xlu0 %v736
    %v738 = vpop.xlane.xlu0 %737
    %v739 = vsub.f32 %v735, %v738
    %v740 = vmul.f32 %v739, 1.442695
    %v741 = vpow.pop %v740
    %v742 = vsel %vm115, %v741, 0.0
    %743 = vadd.xlane.f32.xlu0 %v742
    %v744 = vpop.xlane.xlu0 %743
    %v745 = vrcp.pop %v744
    %v746 = vmul.f32 %v741, %v745
    %v747 = vpack.c.bf16 %v746, %v746
    %748 = vrot.lane.b32.xlu0 %v574, 56
    %v749 = vpop.permute.xlu0 %748
    %v751 = vsel %vm115, %v747, 0
    %v754 = vsel %vm180, %v749, 0
    %756 = vmatprep.subr.bf16.mxu0 0
    %757 = vmatpush1.bf16.msra.mxu0 %v754
    %758 = vmatprep.subr.bf16.mxu0 0
    %759 = vmatpush1.bf16.msra.mxu0 0
    %760 = vmatprep.subr.bf16.mxu0 0
    %761 = vmatpush1.bf16.msra.mxu0 0
    %762 = vmatprep.subr.bf16.mxu0 0
    %763 = vmatpush1.bf16.msra.mxu0 0
    %764 = vmatprep.subr.bf16.mxu0 0
    %765 = vmatpush1.bf16.msra.mxu0 0
    %766 = vmatprep.subr.bf16.mxu0 0
    %767 = vmatpush1.bf16.msra.mxu0 0
    %768 = vmatprep.subr.bf16.mxu0 0
    %769 = vmatpush1.bf16.msra.mxu0 0
    %770 = vmatprep.subr.bf16.mxu0 0
    %771 = vmatpush1.bf16.msra.mxu0 0
    %772 = vmatprep.subr.bf16.mxu0 0
    %773 = vmatpush1.bf16.msra.mxu0 0
    %774 = vmatprep.subr.bf16.mxu0 0
    %775 = vmatpush1.bf16.msra.mxu0 0
    %776 = vmatprep.subr.bf16.mxu0 0
    %777 = vmatpush1.bf16.msra.mxu0 0
    %778 = vmatprep.subr.bf16.mxu0 0
    %779 = vmatpush1.bf16.msra.mxu0 0
    %780 = vmatprep.subr.bf16.mxu0 0
    %781 = vmatpush1.bf16.msra.mxu0 0
    %782 = vmatprep.subr.bf16.mxu0 0
    %783 = vmatpush1.bf16.msra.mxu0 0
    %784 = vmatprep.subr.bf16.mxu0 0
    %785 = vmatpush1.bf16.msra.mxu0 0
    %786 = vmatprep.subr.bf16.mxu0 0
    %787 = vmatpush1.bf16.msra.mxu0 0
    %788 = vmatprep.mubr.bf16.mxu0 0
    %789 = vmatmul.mubr.bf16.gmra.mrb[0].mxu0 %v751
    %v790 = vpop.f32.mrb[0].mxu0
    %v791 = vadd.f32 0.0, %v790
    %v792 = vpop.f32.mrb[0].mxu0
    %v793 = vpop.f32.mrb[0].mxu0
    %v794 = vpop.f32.mrb[0].mxu0
    %795 = vdwg.mxu0
    %796 = vrot.lane.b32.xlu0 %v574, 112
    %v797 = vpop.permute.xlu0 %796
    %798 = vrot.lane.b32.xlu0 %v574, 80
    %v799 = vpop.permute.xlu0 %798
    %v801 = vsel %vm115, %v797, 0
    %v804 = vsel %vm115, %v799, 0
    %806 = vmatprep.subr.bf16.mxu0 0
    %807 = vmatpush1.bf16.xpose.msra.mxu0 %v804
    %808 = vmatprep.subr.bf16.mxu0 0
    %809 = vmatpush1.bf16.xpose.msra.mxu0 0
    %810 = vmatprep.subr.bf16.mxu0 0
    %811 = vmatpush1.bf16.xpose.msra.mxu0 0
    %812 = vmatprep.subr.bf16.mxu0 0
    %813 = vmatpush1.bf16.xpose.msra.mxu0 0
    %814 = vmatprep.subr.bf16.mxu0 0
    %815 = vmatpush1.bf16.xpose.msra.mxu0 0
    %816 = vmatprep.subr.bf16.mxu0 0
    %817 = vmatpush1.bf16.xpose.msra.mxu0 0
    %818 = vmatprep.subr.bf16.mxu0 0
    %819 = vmatpush1.bf16.xpose.msra.mxu0 0
    %820 = vmatprep.subr.bf16.mxu0 0
    %821 = vmatpush1.bf16.xpose.msra.mxu0 0
    %822 = vmatprep.subr.bf16.mxu0 0
    %823 = vmatpush1.bf16.xpose.msra.mxu0 0
    %824 = vmatprep.subr.bf16.mxu0 0
    %825 = vmatpush1.bf16.xpose.msra.mxu0 0
    %826 = vmatprep.subr.bf16.mxu0 0
    %827 = vmatpush1.bf16.xpose.msra.mxu0 0
    %828 = vmatprep.subr.bf16.mxu0 0
    %829 = vmatpush1.bf16.xpose.msra.mxu0 0
    %830 = vmatprep.subr.bf16.mxu0 0
    %831 = vmatpush1.bf16.xpose.msra.mxu0 0
    %832 = vmatprep.subr.bf16.mxu0 0
    %833 = vmatpush1.bf16.xpose.msra.mxu0 0
    %834 = vmatprep.subr.bf16.mxu0 0
    %835 = vmatpush1.bf16.xpose.msra.mxu0 0
    %836 = vmatprep.subr.bf16.mxu0 0
    %837 = vmatpush1.bf16.xpose.msra.mxu0 0
    %838 = vmatprep.mubr.bf16.mxu0 0
    %839 = vmatmul.mubr.bf16.gmra.mrb[0].mxu0 %v801
    %v840 = vpop.f32.mrb[0].mxu0
    %v841 = vadd.f32 0.0, %v840
    %v842 = vpop.f32.mrb[0].mxu0
    %v843 = vpop.f32.mrb[0].mxu0
    %v844 = vpop.f32.mrb[0].mxu0
    %845 = vdwg.mxu0
    %v846 = vsel %vm110, %v841, -1e+10
    %v847 = vsel %vm115, %v846, -inf
    %848 = vmax.xlane.f32.xlu0 %v847
    %v849 = vpop.xlane.xlu0 %848
    %v850 = vsub.f32 %v846, %v849
    %v851 = vmul.f32 %v850, 1.442695
    %v852 = vpow.pop %v851
    %v853 = vsel %vm115, %v852, 0.0
    %854 = vadd.xlane.f32.xlu0 %v853
    %v855 = vpop.xlane.xlu0 %854
    %v856 = vrcp.pop %v855
    %v857 = vmul.f32 %v852, %v856
    %v858 = vpack.c.bf16 %v857, %v857
    %859 = vrot.lane.b32.xlu0 %v574, 48
    %v860 = vpop.permute.xlu0 %859
    %v862 = vsel %vm115, %v858, 0
    %v865 = vsel %vm180, %v860, 0
    %867 = vmatprep.subr.bf16.mxu0 0
    %868 = vmatpush1.bf16.msra.mxu0 %v865
    %869 = vmatprep.subr.bf16.mxu0 0
    %870 = vmatpush1.bf16.msra.mxu0 0
    %871 = vmatprep.subr.bf16.mxu0 0
    %872 = vmatpush1.bf16.msra.mxu0 0
    %873 = vmatprep.subr.bf16.mxu0 0
    %874 = vmatpush1.bf16.msra.mxu0 0
    %875 = vmatprep.subr.bf16.mxu0 0
    %876 = vmatpush1.bf16.msra.mxu0 0
    %877 = vmatprep.subr.bf16.mxu0 0
    %878 = vmatpush1.bf16.msra.mxu0 0
    %879 = vmatprep.subr.bf16.mxu0 0
    %880 = vmatpush1.bf16.msra.mxu0 0
    %881 = vmatprep.subr.bf16.mxu0 0
    %882 = vmatpush1.bf16.msra.mxu0 0
    %883 = vmatprep.subr.bf16.mxu0 0
    %884 = vmatpush1.bf16.msra.mxu0 0
    %885 = vmatprep.subr.bf16.mxu0 0
    %886 = vmatpush1.bf16.msra.mxu0 0
    %887 = vmatprep.subr.bf16.mxu0 0
    %888 = vmatpush1.bf16.msra.mxu0 0
    %889 = vmatprep.subr.bf16.mxu0 0
    %890 = vmatpush1.bf16.msra.mxu0 0
    %891 = vmatprep.subr.bf16.mxu0 0
    %892 = vmatpush1.bf16.msra.mxu0 0
    %893 = vmatprep.subr.bf16.mxu0 0
    %894 = vmatpush1.bf16.msra.mxu0 0
    %895 = vmatprep.subr.bf16.mxu0 0
    %896 = vmatpush1.bf16.msra.mxu0 0
    %897 = vmatprep.subr.bf16.mxu0 0
    %898 = vmatpush1.bf16.msra.mxu0 0
    %899 = vmatprep.mubr.bf16.mxu0 0
    %900 = vmatmul.mubr.bf16.gmra.mrb[0].mxu0 %v862
    %v901 = vpop.f32.mrb[0].mxu0
    %v902 = vadd.f32 0.0, %v901
    %v903 = vpop.f32.mrb[0].mxu0
    %v904 = vpop.f32.mrb[0].mxu0
    %v905 = vpop.f32.mrb[0].mxu0
    %906 = vdwg.mxu0
    %907 = vrot.lane.b32.xlu0 %v574, 104
    %v908 = vpop.permute.xlu0 %907
    %909 = vrot.lane.b32.xlu0 %v574, 72
    %v910 = vpop.permute.xlu0 %909
    %v912 = vsel %vm115, %v908, 0
    %v915 = vsel %vm115, %v910, 0
    %917 = vmatprep.subr.bf16.mxu0 0
    %918 = vmatpush1.bf16.xpose.msra.mxu0 %v915
    %919 = vmatprep.subr.bf16.mxu0 0
    %920 = vmatpush1.bf16.xpose.msra.mxu0 0
    %921 = vmatprep.subr.bf16.mxu0 0
    %922 = vmatpush1.bf16.xpose.msra.mxu0 0
    %923 = vmatprep.subr.bf16.mxu0 0
    %924 = vmatpush1.bf16.xpose.msra.mxu0 0
    %925 = vmatprep.subr.bf16.mxu0 0
    %926 = vmatpush1.bf16.xpose.msra.mxu0 0
    %927 = vmatprep.subr.bf16.mxu0 0
    %928 = vmatpush1.bf16.xpose.msra.mxu0 0
    %929 = vmatprep.subr.bf16.mxu0 0
    %930 = vmatpush1.bf16.xpose.msra.mxu0 0
    %931 = vmatprep.subr.bf16.mxu0 0
    %932 = vmatpush1.bf16.xpose.msra.mxu0 0
    %933 = vmatprep.subr.bf16.mxu0 0
    %934 = vmatpush1.bf16.xpose.msra.mxu0 0
    %935 = vmatprep.subr.bf16.mxu0 0
    %936 = vmatpush1.bf16.xpose.msra.mxu0 0
    %937 = vmatprep.subr.bf16.mxu0 0
    %938 = vmatpush1.bf16.xpose.msra.mxu0 0
    %939 = vmatprep.subr.bf16.mxu0 0
    %940 = vmatpush1.bf16.xpose.msra.mxu0 0
    %941 = vmatprep.subr.bf16.mxu0 0
    %942 = vmatpush1.bf16.xpose.msra.mxu0 0
    %943 = vmatprep.subr.bf16.mxu0 0
    %944 = vmatpush1.bf16.xpose.msra.mxu0 0
    %945 = vmatprep.subr.bf16.mxu0 0
    %946 = vmatpush1.bf16.xpose.msra.mxu0 0
    %947 = vmatprep.subr.bf16.mxu0 0
    %948 = vmatpush1.bf16.xpose.msra.mxu0 0
    %949 = vmatprep.mubr.bf16.mxu0 0
    %950 = vmatmul.mubr.bf16.gmra.mrb[0].mxu0 %v912
    %v951 = vpop.f32.mrb[0].mxu0
    %v952 = vadd.f32 0.0, %v951
    %v953 = vpop.f32.mrb[0].mxu0
    %v954 = vpop.f32.mrb[0].mxu0
    %v955 = vpop.f32.mrb[0].mxu0
    %956 = vdwg.mxu0
    %v957 = vsel %vm110, %v952, -1e+10
    %v958 = vsel %vm115, %v957, -inf
    %959 = vmax.xlane.f32.xlu0 %v958
    %v960 = vpop.xlane.xlu0 %959
    %v961 = vsub.f32 %v957, %v960
    %v962 = vmul.f32 %v961, 1.442695
    %v963 = vpow.pop %v962
    %v964 = vsel %vm115, %v963, 0.0
    %965 = vadd.xlane.f32.xlu0 %v964
    %v966 = vpop.xlane.xlu0 %965
    %v967 = vrcp.pop %v966
    %v968 = vmul.f32 %v963, %v967
    %v969 = vpack.c.bf16 %v968, %v968
    %970 = vrot.lane.b32.xlu0 %v574, 40
    %v971 = vpop.permute.xlu0 %970
    %v973 = vsel %vm115, %v969, 0
    %v976 = vsel %vm180, %v971, 0
    %978 = vmatprep.subr.bf16.mxu0 0
    %979 = vmatpush1.bf16.msra.mxu0 %v976
    %980 = vmatprep.subr.bf16.mxu0 0
    %981 = vmatpush1.bf16.msra.mxu0 0
    %982 = vmatprep.subr.bf16.mxu0 0
    %983 = vmatpush1.bf16.msra.mxu0 0
    %984 = vmatprep.subr.bf16.mxu0 0
    %985 = vmatpush1.bf16.msra.mxu0 0
    %986 = vmatprep.subr.bf16.mxu0 0
    %987 = vmatpush1.bf16.msra.mxu0 0
    %988 = vmatprep.subr.bf16.mxu0 0
    %989 = vmatpush1.bf16.msra.mxu0 0
    %990 = vmatprep.subr.bf16.mxu0 0
    %991 = vmatpush1.bf16.msra.mxu0 0
    %992 = vmatprep.subr.bf16.mxu0 0
    %993 = vmatpush1.bf16.msra.mxu0 0
    %994 = vmatprep.subr.bf16.mxu0 0
    %995 = vmatpush1.bf16.msra.mxu0 0
    %996 = vmatprep.subr.bf16.mxu0 0
    %997 = vmatpush1.bf16.msra.mxu0 0
    %998 = vmatprep.subr.bf16.mxu0 0
    %999 = vmatpush1.bf16.msra.mxu0 0
    %1000 = vmatprep.subr.bf16.mxu0 0
    %1001 = vmatpush1.bf16.msra.mxu0 0
    %1002 = vmatprep.subr.bf16.mxu0 0
    %1003 = vmatpush1.bf16.msra.mxu0 0
    %1004 = vmatprep.subr.bf16.mxu0 0
    %1005 = vmatpush1.bf16.msra.mxu0 0
    %1006 = vmatprep.subr.bf16.mxu0 0
    %1007 = vmatpush1.bf16.msra.mxu0 0
    %1008 = vmatprep.subr.bf16.mxu0 0
    %1009 = vmatpush1.bf16.msra.mxu0 0
    %1010 = vmatprep.mubr.bf16.mxu0 0
    %1011 = vmatmul.mubr.bf16.gmra.mrb[0].mxu0 %v973
    %v1012 = vpop.f32.mrb[0].mxu0
    %v1013 = vadd.f32 0.0, %v1012
    %v1014 = vpop.f32.mrb[0].mxu0
    %v1015 = vpop.f32.mrb[0].mxu0
    %v1016 = vpop.f32.mrb[0].mxu0
    %1017 = vdwg.mxu0
    %1019 = vrot.lane.b32.xlu0 %v791, 8
    %v1020 = vpop.permute.xlu0 %1019
    %1023 = vrot.lane.b32.xlu0 %v902, 16
    %v1024 = vpop.permute.xlu0 %1023
    %1027 = vrot.lane.b32.xlu0 %v1013, 24
    %v1028 = vpop.permute.xlu0 %1027
    %v1030 = vsel %vm115, %v680, %v1020
    %v1031 = vsel %vm570, %v1030, %v1024
    %v1032 = vsel %vm572, %v1031, %v1028
    %v1033 = vpack.c.bf16 %v1032, %v573
    %v1034 = vld [vmem:[%s2] sm:$0xf]
    %v1035 = vld [vmem:[%s2 + $0x4] sm:$0xf]
    %v1036 = vld [vmem:[%s2 + $0x8] sm:$0xf]
    %v1037 = vld [vmem:[%s2 + $0xc] sm:$0xf]
    %v1042 = vunpack.c.l.b16 %v1034
    %v1043 = vunpack.c.l.b16 %v1035
    %v1044 = vunpack.c.l.b16 %v1036
    %v1045 = vunpack.c.l.b16 %v1037
    %v1046 = vpack.c.b16 %v1043, %v1042
    %v1047 = vpack.c.b16 %v1045, %v1044
    %v1051 = vsel %vm61, %v1033, 0
    %1053 = vmatprep.subr.bf16.mxu0 0
    %1054 = vmatpush1.bf16.msra.mxu0 %v1046
    %1055 = vmatprep.subr.bf16.mxu0 0
    %1056 = vmatpush1.bf16.msra.mxu0 %v1047
    %1057 = vmatprep.subr.bf16.mxu0 0
    %1058 = vmatpush1.bf16.msra.mxu0 0
    %1059 = vmatprep.subr.bf16.mxu0 0
    %1060 = vmatpush1.bf16.msra.mxu0 0
    %1061 = vmatprep.subr.bf16.mxu0 0
    %1062 = vmatpush1.bf16.msra.mxu0 0
    %1063 = vmatprep.subr.bf16.mxu0 0
    %1064 = vmatpush1.bf16.msra.mxu0 0
    %1065 = vmatprep.subr.bf16.mxu0 0
    %1066 = vmatpush1.bf16.msra.mxu0 0
    %1067 = vmatprep.subr.bf16.mxu0 0
    %1068 = vmatpush1.bf16.msra.mxu0 0
    %1069 = vmatprep.subr.bf16.mxu0 0
    %1070 = vmatpush1.bf16.msra.mxu0 0
    %1071 = vmatprep.subr.bf16.mxu0 0
    %1072 = vmatpush1.bf16.msra.mxu0 0
    %1073 = vmatprep.subr.bf16.mxu0 0
    %1074 = vmatpush1.bf16.msra.mxu0 0
    %1075 = vmatprep.subr.bf16.mxu0 0
    %1076 = vmatpush1.bf16.msra.mxu0 0
    %1077 = vmatprep.subr.bf16.mxu0 0
    %1078 = vmatpush1.bf16.msra.mxu0 0
    %1079 = vmatprep.subr.bf16.mxu0 0
    %1080 = vmatpush1.bf16.msra.mxu0 0
    %1081 = vmatprep.subr.bf16.mxu0 0
    %1082 = vmatpush1.bf16.msra.mxu0 0
    %1083 = vmatprep.subr.bf16.mxu0 0
    %1084 = vmatpush1.bf16.msra.mxu0 0
    %1085 = vmatprep.mubr.bf16.mxu0 0
    %1086 = vmatmul.mubr.bf16.gmra.mrb[0].mxu0 %v1051
    %v1087 = vpop.f32.mrb[0].mxu0
    %v1088 = vadd.f32 0.0, %v1087
    %v1089 = vpop.f32.mrb[0].mxu0
    %v1090 = vpop.f32.mrb[0].mxu0
    %v1091 = vadd.f32 0.0, %v1090
    %v1092 = vpop.f32.mrb[0].mxu0
    %1093 = vdwg.mxu0
    %v1094 = vadd.f32 %v42, %v1088
    %v1095 = vadd.f32 %v43, %v1091
    %v1096 = vpack.c.bf16 %v1095, %v1094
    %v1097 = vld [vmem:[#allocation2] sm:$0xf]
    %v1098 = vld [vmem:[#allocation2 + $0x4] sm:$0xf]
    %v1099 = vld [vmem:[#allocation2 + $0x8] sm:$0xf]
    %v1100 = vld [vmem:[#allocation2 + $0xc] sm:$0xf]
    %v1101 = vld [vmem:[%s4] sm:$0x1]
    %v1103 = vlaneseq
    %v1104 = vshrl.u32 %v1103, 7
    %v1105 = vsub.s32 0, %v1104
    %v1106 = vrot.slane %v1101, %v1105
    %v1112 = vunpack.c.l.b16 %v1097
    %v1113 = vunpack.c.l.b16 %v1098
    %v1114 = vunpack.c.l.b16 %v1099
    %v1115 = vunpack.c.l.b16 %v1100
    %v1116 = vpack.c.b16 %v1113, %v1112
    %v1117 = vpack.c.b16 %v1115, %v1114
    %v1121 = vsel %vm61, %v1096, 0
    %1123 = vmatprep.subr.bf16.mxu0 0
    %1124 = vmatpush1.bf16.msra.mxu0 %v1116
    %1125 = vmatprep.subr.bf16.mxu0 0
    %1126 = vmatpush1.bf16.msra.mxu0 %v1117
    %1127 = vmatprep.subr.bf16.mxu0 0
    %1128 = vmatpush1.bf16.msra.mxu0 0
    %1129 = vmatprep.subr.bf16.mxu0 0
    %1130 = vmatpush1.bf16.msra.mxu0 0
    %1131 = vmatprep.subr.bf16.mxu0 0
    %1132 = vmatpush1.bf16.msra.mxu0 0
    %1133 = vmatprep.subr.bf16.mxu0 0
    %1134 = vmatpush1.bf16.msra.mxu0 0
    %1135 = vmatprep.subr.bf16.mxu0 0
    %1136 = vmatpush1.bf16.msra.mxu0 0
    %1137 = vmatprep.subr.bf16.mxu0 0
    %1138 = vmatpush1.bf16.msra.mxu0 0
    %1139 = vmatprep.subr.bf16.mxu0 0
    %1140 = vmatpush1.bf16.msra.mxu0 0
    %1141 = vmatprep.subr.bf16.mxu0 0
    %1142 = vmatpush1.bf16.msra.mxu0 0
    %1143 = vmatprep.subr.bf16.mxu0 0
    %1144 = vmatpush1.bf16.msra.mxu0 0
    %1145 = vmatprep.subr.bf16.mxu0 0
    %1146 = vmatpush1.bf16.msra.mxu0 0
    %1147 = vmatprep.subr.bf16.mxu0 0
    %1148 = vmatpush1.bf16.msra.mxu0 0
    %1149 = vmatprep.subr.bf16.mxu0 0
    %1150 = vmatpush1.bf16.msra.mxu0 0
    %1151 = vmatprep.subr.bf16.mxu0 0
    %1152 = vmatpush1.bf16.msra.mxu0 0
    %1153 = vmatprep.subr.bf16.mxu0 0
    %1154 = vmatpush1.bf16.msra.mxu0 0
    %1155 = vmatprep.mubr.bf16.mxu0 0
    %1156 = vmatmul.mubr.bf16.gmra.mrb[0].mxu0 %v1121
    %v1157 = vpop.f32.mrb[0].mxu0
    %v1158 = vadd.f32 %v1106, %v1157
    %v1159 = vpop.f32.mrb[0].mxu0
    %v1160 = vpop.f32.mrb[0].mxu0
    %v1161 = vadd.f32 %v1106, %v1160
    %v1162 = vpop.f32.mrb[0].mxu0
    %1163 = vdwg.mxu0
    %v1164 = vmax.f32 %v1158, 0.0
    %v1165 = vmax.f32 %v1161, 0.0
    %v1166 = vpack.c.bf16 %v1165, %v1164
    %v1167 = vld [vmem:[%s5] sm:$0xf]
    %v1168 = vld [vmem:[%s5 + $0x4] sm:$0xf]
    %v1169 = vld [vmem:[%s5 + $0x8] sm:$0xf]
    %v1170 = vld [vmem:[%s5 + $0xc] sm:$0xf]
    %v1171 = vld [vmem:[%s5 + $0x10] sm:$0xf]
    %v1172 = vld [vmem:[%s5 + $0x14] sm:$0xf]
    %v1173 = vld [vmem:[%s5 + $0x18] sm:$0xf]
    %v1174 = vld [vmem:[%s5 + $0x1c] sm:$0xf]
    %v1175 = vld [vmem:[%s6] sm:$0x1]
    %v1177 = vlaneseq
    %v1178 = vshrl.u32 %v1177, 7
    %v1179 = vsub.s32 0, %v1178
    %v1180 = vrot.slane %v1175, %v1179
    %v1190 = vunpack.c.l.b16 %v1167
    %v1191 = vunpack.c.l.b16 %v1168
    %v1192 = vunpack.c.l.b16 %v1169
    %v1193 = vunpack.c.l.b16 %v1170
    %v1194 = vunpack.c.l.b16 %v1171
    %v1195 = vunpack.c.l.b16 %v1172
    %v1196 = vunpack.c.l.b16 %v1173
    %v1197 = vunpack.c.l.b16 %v1174
    %v1198 = vpack.c.b16 %v1191, %v1190
    %v1199 = vpack.c.b16 %v1193, %v1192
    %v1200 = vpack.c.b16 %v1195, %v1194
    %v1201 = vpack.c.b16 %v1197, %v1196
    %vm1206 = vcmask 523264
    %v1208 = vsel %vm1206, %v1166, 0
    %1210 = vmatprep.subr.bf16.mxu0 0
    %1211 = vmatpush1.bf16.msra.mxu0 %v1198
    %1212 = vmatprep.subr.bf16.mxu0 0
    %1213 = vmatpush1.bf16.msra.mxu0 %v1199
    %1214 = vmatprep.subr.bf16.mxu0 0
    %1215 = vmatpush1.bf16.msra.mxu0 %v1200
    %1216 = vmatprep.subr.bf16.mxu0 0
    %1217 = vmatpush1.bf16.msra.mxu0 %v1201
    %1218 = vmatprep.subr.bf16.mxu0 0
    %1219 = vmatpush1.bf16.msra.mxu0 0
    %1220 = vmatprep.subr.bf16.mxu0 0
    %1221 = vmatpush1.bf16.msra.mxu0 0
    %1222 = vmatprep.subr.bf16.mxu0 0
    %1223 = vmatpush1.bf16.msra.mxu0 0
    %1224 = vmatprep.subr.bf16.mxu0 0
    %1225 = vmatpush1.bf16.msra.mxu0 0
    %1226 = vmatprep.subr.bf16.mxu0 0
    %1227 = vmatpush1.bf16.msra.mxu0 0
    %1228 = vmatprep.subr.bf16.mxu0 0
    %1229 = vmatpush1.bf16.msra.mxu0 0
    %1230 = vmatprep.subr.bf16.mxu0 0
    %1231 = vmatpush1.bf16.msra.mxu0 0
    %1232 = vmatprep.subr.bf16.mxu0 0
    %1233 = vmatpush1.bf16.msra.mxu0 0
    %1234 = vmatprep.subr.bf16.mxu0 0
    %1235 = vmatpush1.bf16.msra.mxu0 0
    %1236 = vmatprep.subr.bf16.mxu0 0
    %1237 = vmatpush1.bf16.msra.mxu0 0
    %1238 = vmatprep.subr.bf16.mxu0 0
    %1239 = vmatpush1.bf16.msra.mxu0 0
    %1240 = vmatprep.subr.bf16.mxu0 0
    %1241 = vmatpush1.bf16.msra.mxu0 0
    %1242 = vmatprep.mubr.bf16.mxu0 0
    %1243 = vmatmul.mubr.bf16.gmra.mrb[0].mxu0 %v1208
    %v1244 = vpop.f32.mrb[0].mxu0
    %v1245 = vadd.f32 %v1180, %v1244
    %v1246 = vpop.f32.mrb[0].mxu0
    %v1247 = vpop.f32.mrb[0].mxu0
    %v1248 = vadd.f32 %v1180, %v1247
    %v1249 = vpop.f32.mrb[0].mxu0
    %1250 = vdwg.mxu0
    %v1251 = vadd.f32 %v1094, %v1245
    %v1252 = vadd.f32 %v1095, %v1248
    %1253 = vst.msk [vmem:[#allocation5] sm:$0xff] %vm61, %v1251
    %1254 = vst.msk [vmem:[#allocation5 + $0x8] sm:$0xff] %vm61, %v1252
    // Predicated region
    $region34: #{tpu_custom_call.1} parent=1 // pred_check
      _
    $region35: #{tpu_custom_call.1} parent=1 // pred_check_branch
      %1256 = sbr.rel (0) target = $region37
    $region36: #{tpu_custom_call.1} parent=1 // pred_region
      %s1258 = ssub.s32 256, 256
      %1259 = vsyncadd [#allocation4], %s1258
      %s1260 = sshll.u32 [#allocation5], 4
      %s1261 = int_to_ptr.vmem [resolvable:$true] %s1260
      %1266 = dma.vmem_to_hbm [thread:$0]  %s1261, 256, %s7, [#allocation4], 128, 128, 8
    $region37: #{tpu_custom_call.1} parent=1 // pred_fallthru
      _
    // Predicated region
    $region38: #{tpu_custom_call.1} parent=1 // pred_check
      _
    $region39: #{tpu_custom_call.1} parent=1 // pred_check_branch
      %1268 = sbr.rel (0) target = $region41
    $region40: #{tpu_custom_call.1} parent=1 // pred_region
      %1269 = dma.done [#allocation4], 256
    $region41: #{tpu_custom_call.1} parent=1 // pred_fallthru
      _
    %1270 = vsyncpa [#allocation3], 1
    %1271 = vsyncpa [#allocation4], 1

</llo_original>
